<compile_context>
chip_gen: v7x
topology: tpu7x:2x2x1
jax: 0.10.0
libtpu: 0.0.40
codegen_flags: <defaults>
</compile_context>

<pallas_src>
import functools
import math

import jax
import jax.numpy as jnp
from jax.experimental import pallas as pl
from jax.experimental.pallas import tpu as pltpu


_LANE = 128      # lane width (last dim)
_SUBLANE = 8     # f32 sublane count (second-to-last dim)
_MIB = 1024 * 1024


def _round_up(x, m):
    return ((x + m - 1) // m) * m


def _physical_vmem_bytes():
    """Physical VMEM per TensorCore (128 MiB on v5e/v6e, 64 MiB on v7x)."""
    try:
        return int(pltpu.get_tpu_info().vmem_capacity_bytes)
    except Exception:
        return 128 * _MIB


def _default_batch_tile():
    # v7x (64 MiB VMEM/TC): smaller batch tile so the [TB, 4Hp] f32 gates
    # intermediate + live values fit without spilling; v5e/v6e (128 MiB,
    # MXU-bound): keep TB large to amortize per-grid-step overhead.
    return 128 if _physical_vmem_bytes() <= 64 * _MIB else 256


def _vmem_limit_bytes():
    # Never request all of physical VMEM (leaves nothing for compiler
    # internal scratch on v7x); 64 MiB is safe on 128 MiB parts.
    return min(64 * _MIB, (_physical_vmem_bytes() * 3) // 4)


def _sigmoid(x):
    # sigmoid(x) == 0.5*tanh(0.5*x) + 0.5 (exact identity): a single EUP pass
    # (tanh) instead of exp + reciprocal; the muls/adds go to spare VALU slots.
    return 0.5 * jnp.tanh(0.5 * x) + 0.5


def _make_kernel(hidden_size_p: int, peephole: bool):
    Hp = hidden_size_p

    def _body(xh_ref, c_ref, w_ref, b_ref, peep_ref, proj_ref,
              r_ref, c_out_ref):
        # Single fused gate matmul: gates = [x|h] @ W.T + b
        # (bf16 operands, f32 accumulation on the MXU; forget_bias is already
        # folded into the f-gate slab of b).
        gates = (jnp.dot(xh_ref[...], w_ref[...],
                         preferred_element_type=jnp.float32)
                 + b_ref[...])

        c_prev = c_ref[...]                       # f32 state

        # Hp is a multiple of 128 -> lane-aligned gate slices (order i,j,f,o).
        i_g = gates[:, 0 * Hp:1 * Hp]
        j_g = gates[:, 1 * Hp:2 * Hp]
        f_g = gates[:, 2 * Hp:3 * Hp]
        o_g = gates[:, 3 * Hp:4 * Hp]

        if peephole:
            w_f = peep_ref[0:1, :]
            w_i = peep_ref[1:2, :]
            w_o = peep_ref[2:3, :]
            c_new = (_sigmoid(f_g + w_f * c_prev) * c_prev
                     + _sigmoid(i_g + w_i * c_prev) * jnp.tanh(j_g))
            m = _sigmoid(o_g + w_o * c_new) * jnp.tanh(c_new)
        else:
            c_new = (_sigmoid(f_g) * c_prev
                     + _sigmoid(i_g) * jnp.tanh(j_g))
            m = _sigmoid(o_g) * jnp.tanh(c_new)

        # r = m @ projection.weight.T   (bf16 operands, f32 accumulation)
        r_ref[...] = jnp.dot(m.astype(jnp.bfloat16), proj_ref[...],
                             preferred_element_type=jnp.float32
                             ).astype(r_ref.dtype)
        c_out_ref[...] = c_new

    if peephole:
        kernel = _body
    else:
        def kernel(xh_ref, c_ref, w_ref, b_ref, proj_ref, r_ref, c_out_ref):
            _body(xh_ref, c_ref, w_ref, b_ref, None, proj_ref,
                  r_ref, c_out_ref)

    return kernel


def prepare_params(params, input_size, hidden_size, proj_size,
                   peephole=True, forget_bias=1.0):
    """One-time weight prep (run once, NOT per timestep).

    * Splits W into its x / h parts, transposes, pads every gate to a
      lane-aligned [*, Hp] slab and stacks both parts into a single fused
      [Ip+Pp, 4*Hp] bf16 matrix (one MXU contraction in the kernel).
    * Folds forget_bias into the f-gate slab of the bias.
    * Packs the three peephole diagonals into one [8, Hp] f32 block.
    """
    Ip = _round_up(input_size, _LANE)
    Pp = _round_up(proj_size, _LANE)
    Hp = _round_up(hidden_size, _LANE)
    H = hidden_size

    weight = jnp.asarray(params["weight"], jnp.float32)        # [4H, I+P]
    bias = jnp.asarray(params["bias"], jnp.float32)            # [4H]
    proj_w = jnp.asarray(params["proj_weight"], jnp.float32)   # [P, H]

    def pad_gate_t(w, in_dim, in_dim_p):
        # w: [4H, in_dim] -> [in_dim_p, 4*Hp] (transposed, gate-blocked)
        w4 = w.reshape(4, H, in_dim)
        w4 = jnp.pad(w4, ((0, 0), (0, Hp - H), (0, in_dim_p - in_dim)))
        return jnp.transpose(w4, (2, 0, 1)).reshape(in_dim_p, 4 * Hp)

    wx_t = pad_gate_t(weight[:, :input_size], input_size, Ip)   # [Ip, 4Hp]
    wh_t = pad_gate_t(weight[:, input_size:], proj_size, Pp)    # [Pp, 4Hp]
    w_cat_t = jnp.concatenate([wx_t, wh_t], axis=0).astype(jnp.bfloat16)

    b4 = bias.reshape(4, H)                                     # i, j, f, o
    b4 = b4.at[2].add(jnp.float32(forget_bias))                 # fold forget_bias
    b4 = jnp.pad(b4, ((0, 0), (0, Hp - H)))
    bias2 = b4.reshape(1, 4 * Hp)                               # [1, 4Hp] f32

    proj_t = jnp.pad(jnp.transpose(proj_w),
                     ((0, Hp - H), (0, Pp - proj_size))).astype(jnp.bfloat16)

    prepared = {"w_cat_t": w_cat_t, "bias": bias2, "proj_t": proj_t}
    if peephole:
        diag = jnp.stack([jnp.asarray(params["w_f_diag"], jnp.float32),
                          jnp.asarray(params["w_i_diag"], jnp.float32),
                          jnp.asarray(params["w_o_diag"], jnp.float32)])
        prepared["peep"] = jnp.pad(diag, ((0, _SUBLANE - 3), (0, Hp - H)))
    return prepared


@functools.partial(
    jax.jit,
    static_argnames=("peephole", "batch_tile", "r_dtype",
                     "single_buffer_weights"))
def _tf_lstm_cell_impl(x, h, c, prepared, *, peephole, batch_tile, r_dtype,
                       single_buffer_weights):
    B, input_size = x.shape
    proj_size = h.shape[1]
    hidden_size = c.shape[1]

    Ip = _round_up(input_size, _LANE)
    Pp = _round_up(proj_size, _LANE)
    Hp = _round_up(hidden_size, _LANE)

    if batch_tile is None:
        batch_tile = _default_batch_tile()
    TB = _round_up(min(batch_tile, _round_up(B, _SUBLANE)), _SUBLANE)
    # On 2-TC parts (v7x, identified by its 64 MiB VMEM), prefer >=2 grid
    # steps so the "parallel" batch axis can shard across both TensorCores
    # and the activation DMA pipelines behind compute.  v5e/v6e keep TB large.
    if (_physical_vmem_bytes() <= 64 * _MIB and B > _SUBLANE
            and _round_up(B, TB) == TB and TB >= 2 * _SUBLANE):
        TB = _round_up((TB + 1) // 2, _SUBLANE)
    Bp = _round_up(B, TB)
    grid = (Bp // TB,)

    # Zero padding is exact: padded rows/lanes stay zero through the gate math
    # and are sliced off at the end.
    xh = jnp.concatenate(
        [jnp.pad(x.astype(jnp.float32), ((0, Bp - B), (0, Ip - input_size))),
         jnp.pad(h.astype(jnp.float32), ((0, Bp - B), (0, Pp - proj_size)))],
        axis=1).astype(jnp.bfloat16)                            # [Bp, Ip+Pp]
    cp = jnp.pad(c.astype(jnp.float32),
                 ((0, Bp - B), (0, Hp - hidden_size)))           # [Bp, Hp] f32

    def row_spec(cols):               # batch-tiled activations / outputs
        return pl.BlockSpec((TB, cols), lambda i: (i, 0))

    def resident(shape):
        # Constant index_map -> fetched once, stays in VMEM across grid steps.
        if single_buffer_weights:
            # Buffered(1): drop the useless second buffer for blocks that
            # never change (halves weight VMEM).
            return pl.BlockSpec(shape, lambda i: (0, 0),
                                pipeline_mode=pl.Buffered(1))
        return pl.BlockSpec(shape, lambda i: (0, 0))

    in_specs = [
        row_spec(Ip + Pp),                 # [x|h]       (bf16)
        row_spec(Hp),                      # c           (f32)
        resident((Ip + Pp, 4 * Hp)),       # fused W^T   (bf16)
        resident((1, 4 * Hp)),             # bias        (f32, forget_bias folded)
    ]
    args = [xh, cp, prepared["w_cat_t"], prepared["bias"]]
    if peephole:
        in_specs.append(resident((_SUBLANE, Hp)))   # packed peephole diags
        args.append(prepared["peep"])
    in_specs.append(resident((Hp, Pp)))             # proj^T (bf16)
    args.append(prepared["proj_t"])

    kernel = _make_kernel(Hp, peephole)

    r_p, c_p = pl.pallas_call(
        kernel,
        grid=grid,
        out_shape=(jax.ShapeDtypeStruct((Bp, Pp), r_dtype),
                   jax.ShapeDtypeStruct((Bp, Hp), jnp.float32)),
        in_specs=in_specs,
        out_specs=(row_spec(Pp), row_spec(Hp)),
        # c (input 1, the fresh padded copy built above — safe to donate)
        # aliases c_new (output 1): in-place state update.
        input_output_aliases={1: 1},
        compiler_params=pltpu.CompilerParams(
            dimension_semantics=("parallel",),
            vmem_limit_bytes=_vmem_limit_bytes()),
    )(*args)

    return r_p[:B, :proj_size], c_p[:B, :hidden_size]


_SINGLE_BUFFER = "untested"   # "untested" | "ok" | "unsupported"


def tf_lstm_cell(x, h, c, prepared, *, peephole=True, batch_tile=None,
                 r_dtype=jnp.float32):
    """Pallas implementation of TFLSTMCell.forward. Returns (r, c_new).

    r_dtype=jnp.bfloat16 halves r's HBM writeback (useful on v5e; r becomes
    the next-step h, which is consumed in bf16 anyway).
    """
    global _SINGLE_BUFFER
    if _SINGLE_BUFFER != "unsupported":
        try:
            out = _tf_lstm_cell_impl(
                x, h, c, prepared, peephole=peephole, batch_tile=batch_tile,
                r_dtype=r_dtype, single_buffer_weights=True)
            if _SINGLE_BUFFER == "untested":
                jax.block_until_ready(out)   # surface compile errors once
                _SINGLE_BUFFER = "ok"
            return out
        except Exception:
            # Installed jax does not honor pl.Buffered(1) on the top-level
            # pallas_call pipeline -> fall back to default double buffering.
            _SINGLE_BUFFER = "unsupported"
    return _tf_lstm_cell_impl(
        x, h, c, prepared, peephole=peephole, batch_tile=batch_tile,
        r_dtype=r_dtype, single_buffer_weights=False)


def init_params(key, input_size, hidden_size, proj_size, peephole=True):
    """Deterministic init mirroring reset_parameters(): U(-stdv, stdv)."""
    stdv = 1.0 / math.sqrt(hidden_size)
    ks = jax.random.split(key, 6)
    params = {
        "weight": jax.random.uniform(
            ks[0], (4 * hidden_size, input_size + proj_size),
            jnp.float32, -stdv, stdv),
        "bias": jax.random.uniform(
            ks[1], (4 * hidden_size,), jnp.float32, -stdv, stdv),
        "proj_weight": jax.random.uniform(
            ks[2], (proj_size, hidden_size), jnp.float32, -stdv, stdv),
    }
    if peephole:
        params["w_f_diag"] = jax.random.uniform(
            ks[3], (hidden_size,), jnp.float32, -stdv, stdv)
        params["w_i_diag"] = jax.random.uniform(
            ks[4], (hidden_size,), jnp.float32, -stdv, stdv)
        params["w_o_diag"] = jax.random.uniform(
            ks[5], (hidden_size,), jnp.float32, -stdv, stdv)
    return params


def _reference(x, h, c, params, *, hidden_size, peephole, forget_bias):
    cat = jnp.concatenate([x, h], axis=-1)
    gates = cat @ params["weight"].T + params["bias"]
    H = hidden_size
    i_g, j_g, f_g, o_g = (gates[:, 0:H], gates[:, H:2 * H],
                          gates[:, 2 * H:3 * H], gates[:, 3 * H:4 * H])
    if peephole:
        c_new = (jax.nn.sigmoid(f_g + params["w_f_diag"] * c + forget_bias) * c
                 + jax.nn.sigmoid(i_g + params["w_i_diag"] * c) * jnp.tanh(j_g))
        m = jax.nn.sigmoid(o_g + params["w_o_diag"] * c_new) * jnp.tanh(c_new)
    else:
        c_new = (jax.nn.sigmoid(f_g + forget_bias) * c
                 + jax.nn.sigmoid(i_g) * jnp.tanh(j_g))
        m = jax.nn.sigmoid(o_g) * jnp.tanh(c_new)
    r = m @ params["proj_weight"].T
    return r, c_new


if __name__ == "__main__":
    B, input_size, hidden_size, proj_size = 4, 16, 32, 16
    forget_bias = 1.0

    key = jax.random.PRNGKey(0)
    k_param, k_x, k_h, k_c = jax.random.split(key, 4)

    x = jax.random.normal(k_x, (B, input_size), jnp.float32)
    h = jax.random.normal(k_h, (B, proj_size), jnp.float32)
    c = jax.random.normal(k_c, (B, hidden_size), jnp.float32)

    for peephole in (True, False):
        params = init_params(k_param, input_size, hidden_size, proj_size,
                             peephole)
        prepared = prepare_params(params, input_size, hidden_size, proj_size,
                                  peephole=peephole, forget_bias=forget_bias)
        r, c_new = tf_lstm_cell(x, h, c, prepared, peephole=peephole)
        jax.block_until_ready((r, c_new))

        r_ref, c_ref = _reference(x, h, c, params, hidden_size=hidden_size,
                                  peephole=peephole, forget_bias=forget_bias)
        # bf16 matmul operands (f32 accumulation) -> loosened tolerance.
        assert jnp.allclose(r, r_ref, atol=3e-2, rtol=3e-2), "r mismatch"
        assert jnp.allclose(c_new, c_ref, atol=3e-2, rtol=3e-2), "c mismatch"

    print("KERNEL_OK")
</pallas_src>

<mosaic_0001>
module attributes {stable_mosaic.version = 11 : i64} {
  func.func @_body(%arg0: i32, %arg1: memref<8x256xbf16, #tpu.memory_space<vmem>>, %arg2: memref<8x128xf32, #tpu.memory_space<vmem>>, %arg3: memref<256x512xbf16, #tpu.memory_space<vmem>>, %arg4: memref<1x512xf32, #tpu.memory_space<vmem>>, %arg5: memref<8x128xf32, #tpu.memory_space<vmem>>, %arg6: memref<128x128xbf16, #tpu.memory_space<vmem>>, %arg7: memref<8x128xf32, #tpu.memory_space<vmem>>, %arg8: memref<8x128xf32, #tpu.memory_space<vmem>>) attributes {dimension_semantics = [#tpu.dimension_semantics<parallel>], iteration_bounds = array<i64: 1>, scalar_prefetch = 0 : i64, scratch_operands = 0 : i64, tpu.core_type = #tpu.core_type<tc>, window_params = [{transform_indices = @transform_0, window_bounds = array<i64: 8, 256>}, {transform_indices = @transform_1, window_bounds = array<i64: 8, 128>}, {pipeline_mode = #tpu.pipeline_mode<synchronous>, transform_indices = @transform_2, window_bounds = array<i64: 256, 512>}, {pipeline_mode = #tpu.pipeline_mode<synchronous>, transform_indices = @transform_3, window_bounds = array<i64: 1, 512>}, {pipeline_mode = #tpu.pipeline_mode<synchronous>, transform_indices = @transform_4, window_bounds = array<i64: 8, 128>}, {pipeline_mode = #tpu.pipeline_mode<synchronous>, transform_indices = @transform_5, window_bounds = array<i64: 128, 128>}, {transform_indices = @transform_6, window_bounds = array<i64: 8, 128>}, {transform_indices = @transform_7, window_bounds = array<i64: 8, 128>}]} {
    %c0 = arith.constant 0 : index
    %c0_0 = arith.constant 0 : index
    %0 = vector.load %arg1[%c0, %c0_0] : memref<8x256xbf16, #tpu.memory_space<vmem>>, vector<8x256xbf16>
    %c0_1 = arith.constant 0 : index
    %c0_2 = arith.constant 0 : index
    %1 = vector.load %arg3[%c0_1, %c0_2] : memref<256x512xbf16, #tpu.memory_space<vmem>>, vector<256x512xbf16>
    %cst = arith.constant dense<0.000000e+00> : vector<8x512xf32>
    %2 = tpu.matmul %0, %1, %cst {dimension_numbers = #tpu.dot_dimension_numbers<[1], [0], [0], [1], [0, 0, 1, 1], [], []>} : vector<8x256xbf16>, vector<256x512xbf16>, vector<8x512xf32> -> vector<8x512xf32>
    %c0_3 = arith.constant 0 : index
    %c0_4 = arith.constant 0 : index
    %3 = vector.load %arg4[%c0_3, %c0_4] : memref<1x512xf32, #tpu.memory_space<vmem>>, vector<1x512xf32>
    %4 = vector.broadcast %3 : vector<1x512xf32> to vector<8x512xf32>
    %5 = arith.addf %2, %4 : vector<8x512xf32>
    %c0_5 = arith.constant 0 : index
    %c0_6 = arith.constant 0 : index
    %6 = vector.load %arg2[%c0_5, %c0_6] : memref<8x128xf32, #tpu.memory_space<vmem>>, vector<8x128xf32>
    %7 = vector.extract_strided_slice %5 {offsets = [0, 0], sizes = [8, 128], strides = [1, 1]} : vector<8x512xf32> to vector<8x128xf32>
    %8 = vector.extract_strided_slice %5 {offsets = [0, 128], sizes = [8, 128], strides = [1, 1]} : vector<8x512xf32> to vector<8x128xf32>
    %9 = vector.extract_strided_slice %5 {offsets = [0, 256], sizes = [8, 128], strides = [1, 1]} : vector<8x512xf32> to vector<8x128xf32>
    %10 = vector.extract_strided_slice %5 {offsets = [0, 384], sizes = [8, 128], strides = [1, 1]} : vector<8x512xf32> to vector<8x128xf32>
    %c0_7 = arith.constant 0 : index
    %c0_8 = arith.constant 0 : index
    %11 = vector.load %arg5[%c0_7, %c0_8] : memref<8x128xf32, #tpu.memory_space<vmem>>, vector<1x128xf32>
    %c1 = arith.constant 1 : index
    %c0_9 = arith.constant 0 : index
    %12 = vector.load %arg5[%c1, %c0_9] : memref<8x128xf32, #tpu.memory_space<vmem>>, vector<1x128xf32>
    %c2 = arith.constant 2 : index
    %c0_10 = arith.constant 0 : index
    %13 = vector.load %arg5[%c2, %c0_10] : memref<8x128xf32, #tpu.memory_space<vmem>>, vector<1x128xf32>
    %14 = vector.broadcast %11 : vector<1x128xf32> to vector<8x128xf32>
    %15 = arith.mulf %14, %6 : vector<8x128xf32>
    %16 = arith.addf %9, %15 : vector<8x128xf32>
    %cst_11 = arith.constant 5.000000e-01 : f32
    %17 = vector.broadcast %cst_11 : f32 to vector<8x128xf32>
    %18 = arith.mulf %17, %16 : vector<8x128xf32>
    %19 = math.tanh %18 : vector<8x128xf32>
    %cst_12 = arith.constant 5.000000e-01 : f32
    %20 = vector.broadcast %cst_12 : f32 to vector<8x128xf32>
    %21 = arith.mulf %20, %19 : vector<8x128xf32>
    %cst_13 = arith.constant 5.000000e-01 : f32
    %22 = vector.broadcast %cst_13 : f32 to vector<8x128xf32>
    %23 = arith.addf %21, %22 : vector<8x128xf32>
    %24 = arith.mulf %23, %6 : vector<8x128xf32>
    %25 = vector.broadcast %12 : vector<1x128xf32> to vector<8x128xf32>
    %26 = arith.mulf %25, %6 : vector<8x128xf32>
    %27 = arith.addf %7, %26 : vector<8x128xf32>
    %cst_14 = arith.constant 5.000000e-01 : f32
    %28 = vector.broadcast %cst_14 : f32 to vector<8x128xf32>
    %29 = arith.mulf %28, %27 : vector<8x128xf32>
    %30 = math.tanh %29 : vector<8x128xf32>
    %cst_15 = arith.constant 5.000000e-01 : f32
    %31 = vector.broadcast %cst_15 : f32 to vector<8x128xf32>
    %32 = arith.mulf %31, %30 : vector<8x128xf32>
    %cst_16 = arith.constant 5.000000e-01 : f32
    %33 = vector.broadcast %cst_16 : f32 to vector<8x128xf32>
    %34 = arith.addf %32, %33 : vector<8x128xf32>
    %35 = math.tanh %8 : vector<8x128xf32>
    %36 = arith.mulf %34, %35 : vector<8x128xf32>
    %37 = arith.addf %24, %36 : vector<8x128xf32>
    %38 = vector.broadcast %13 : vector<1x128xf32> to vector<8x128xf32>
    %39 = arith.mulf %38, %37 : vector<8x128xf32>
    %40 = arith.addf %10, %39 : vector<8x128xf32>
    %cst_17 = arith.constant 5.000000e-01 : f32
    %41 = vector.broadcast %cst_17 : f32 to vector<8x128xf32>
    %42 = arith.mulf %41, %40 : vector<8x128xf32>
    %43 = math.tanh %42 : vector<8x128xf32>
    %cst_18 = arith.constant 5.000000e-01 : f32
    %44 = vector.broadcast %cst_18 : f32 to vector<8x128xf32>
    %45 = arith.mulf %44, %43 : vector<8x128xf32>
    %cst_19 = arith.constant 5.000000e-01 : f32
    %46 = vector.broadcast %cst_19 : f32 to vector<8x128xf32>
    %47 = arith.addf %45, %46 : vector<8x128xf32>
    %48 = math.tanh %37 : vector<8x128xf32>
    %49 = arith.mulf %47, %48 : vector<8x128xf32>
    %50 = arith.truncf %49 : vector<8x128xf32> to vector<8x128xbf16>
    %c0_20 = arith.constant 0 : index
    %c0_21 = arith.constant 0 : index
    %51 = vector.load %arg6[%c0_20, %c0_21] : memref<128x128xbf16, #tpu.memory_space<vmem>>, vector<128x128xbf16>
    %cst_22 = arith.constant dense<0.000000e+00> : vector<8x128xf32>
    %52 = tpu.matmul %50, %51, %cst_22 {dimension_numbers = #tpu.dot_dimension_numbers<[1], [0], [0], [1], [0, 0, 1, 1], [], []>} : vector<8x128xbf16>, vector<128x128xbf16>, vector<8x128xf32> -> vector<8x128xf32>
    %c0_23 = arith.constant 0 : index
    %c0_24 = arith.constant 0 : index
    %53 = vector.load %arg7[%c0_23, %c0_24] : memref<8x128xf32, #tpu.memory_space<vmem>>, vector<8x128xf32>
    tpu.vector_store %arg7[%c0_23, %c0_24], %52 {strides = array<i32>} : memref<8x128xf32, #tpu.memory_space<vmem>>, vector<8x128xf32>,
    %c0_25 = arith.constant 0 : index
    %c0_26 = arith.constant 0 : index
    %54 = vector.load %arg8[%c0_25, %c0_26] : memref<8x128xf32, #tpu.memory_space<vmem>>, vector<8x128xf32>
    tpu.vector_store %arg8[%c0_25, %c0_26], %37 {strides = array<i32>} : memref<8x128xf32, #tpu.memory_space<vmem>>, vector<8x128xf32>,
    return
  }
  func.func @transform_0(%arg0: i32) -> (i32, i32) {
    %c0_i32 = arith.constant 0 : i32
    %c0_i32_0 = arith.constant 0 : i32
    return %arg0, %c0_i32 : i32, i32
  }
  func.func @transform_1(%arg0: i32) -> (i32, i32) {
    %c0_i32 = arith.constant 0 : i32
    %c0_i32_0 = arith.constant 0 : i32
    return %arg0, %c0_i32 : i32, i32
  }
  func.func @transform_2(%arg0: i32) -> (i32, i32) {
    %c0_i32 = arith.constant 0 : i32
    %c0_i32_0 = arith.constant 0 : i32
    %c0_i32_1 = arith.constant 0 : i32
    return %c0_i32, %c0_i32_0 : i32, i32
  }
  func.func @transform_3(%arg0: i32) -> (i32, i32) {
    %c0_i32 = arith.constant 0 : i32
    %c0_i32_0 = arith.constant 0 : i32
    %c0_i32_1 = arith.constant 0 : i32
    return %c0_i32, %c0_i32_0 : i32, i32
  }
  func.func @transform_4(%arg0: i32) -> (i32, i32) {
    %c0_i32 = arith.constant 0 : i32
    %c0_i32_0 = arith.constant 0 : i32
    %c0_i32_1 = arith.constant 0 : i32
    return %c0_i32, %c0_i32_0 : i32, i32
  }
  func.func @transform_5(%arg0: i32) -> (i32, i32) {
    %c0_i32 = arith.constant 0 : i32
    %c0_i32_0 = arith.constant 0 : i32
    %c0_i32_1 = arith.constant 0 : i32
    return %c0_i32, %c0_i32_0 : i32, i32
  }
  func.func @transform_6(%arg0: i32) -> (i32, i32) {
    %c0_i32 = arith.constant 0 : i32
    %c0_i32_0 = arith.constant 0 : i32
    return %arg0, %c0_i32 : i32, i32
  }
  func.func @transform_7(%arg0: i32) -> (i32, i32) {
    %c0_i32 = arith.constant 0 : i32
    %c0_i32_0 = arith.constant 0 : i32
    return %arg0, %c0_i32 : i32, i32
  }
}

module attributes {stable_mosaic.version = 11 : i64} {
  func.func @_body(%arg0: i32, %arg1: memref<8x256xbf16, #tpu.memory_space<vmem>>, %arg2: memref<8x128xf32, #tpu.memory_space<vmem>>, %arg3: memref<256x512xbf16, #tpu.memory_space<vmem>>, %arg4: memref<1x512xf32, #tpu.memory_space<vmem>>, %arg5: memref<8x128xf32, #tpu.memory_space<vmem>>, %arg6: memref<128x128xbf16, #tpu.memory_space<vmem>>, %arg7: memref<8x128xf32, #tpu.memory_space<vmem>>, %arg8: memref<8x128xf32, #tpu.memory_space<vmem>>) attributes {dimension_semantics = [#tpu.dimension_semantics<parallel>], iteration_bounds = array<i64: 1>, scalar_prefetch = 0 : i64, scratch_operands = 0 : i64, tpu.core_type = #tpu.core_type<tc>, window_params = [{transform_indices = @transform_0, window_bounds = array<i64: 8, 256>}, {transform_indices = @transform_1, window_bounds = array<i64: 8, 128>}, {pipeline_mode = #tpu.pipeline_mode<synchronous>, transform_indices = @transform_2, window_bounds = array<i64: 256, 512>}, {pipeline_mode = #tpu.pipeline_mode<synchronous>, transform_indices = @transform_3, window_bounds = array<i64: 1, 512>}, {pipeline_mode = #tpu.pipeline_mode<synchronous>, transform_indices = @transform_4, window_bounds = array<i64: 8, 128>}, {pipeline_mode = #tpu.pipeline_mode<synchronous>, transform_indices = @transform_5, window_bounds = array<i64: 128, 128>}, {transform_indices = @transform_6, window_bounds = array<i64: 8, 128>}, {transform_indices = @transform_7, window_bounds = array<i64: 8, 128>}]} {
    %c0 = arith.constant 0 : index
    %c0_0 = arith.constant 0 : index
    %0 = vector.load %arg1[%c0, %c0_0] : memref<8x256xbf16, #tpu.memory_space<vmem>>, vector<8x256xbf16>
    %c0_1 = arith.constant 0 : index
    %c0_2 = arith.constant 0 : index
    %1 = vector.load %arg3[%c0_1, %c0_2] : memref<256x512xbf16, #tpu.memory_space<vmem>>, vector<256x512xbf16>
    %cst = arith.constant dense<0.000000e+00> : vector<8x512xf32>
    %2 = tpu.matmul %0, %1, %cst {dimension_numbers = #tpu.dot_dimension_numbers<[1], [0], [0], [1], [0, 0, 1, 1], [], []>} : vector<8x256xbf16>, vector<256x512xbf16>, vector<8x512xf32> -> vector<8x512xf32>
    %c0_3 = arith.constant 0 : index
    %c0_4 = arith.constant 0 : index
    %3 = vector.load %arg4[%c0_3, %c0_4] : memref<1x512xf32, #tpu.memory_space<vmem>>, vector<1x512xf32>
    %4 = vector.broadcast %3 : vector<1x512xf32> to vector<8x512xf32>
    %5 = arith.addf %2, %4 : vector<8x512xf32>
    %c0_5 = arith.constant 0 : index
    %c0_6 = arith.constant 0 : index
    %6 = vector.load %arg2[%c0_5, %c0_6] : memref<8x128xf32, #tpu.memory_space<vmem>>, vector<8x128xf32>
    %7 = vector.extract_strided_slice %5 {offsets = [0, 0], sizes = [8, 128], strides = [1, 1]} : vector<8x512xf32> to vector<8x128xf32>
    %8 = vector.extract_strided_slice %5 {offsets = [0, 128], sizes = [8, 128], strides = [1, 1]} : vector<8x512xf32> to vector<8x128xf32>
    %9 = vector.extract_strided_slice %5 {offsets = [0, 256], sizes = [8, 128], strides = [1, 1]} : vector<8x512xf32> to vector<8x128xf32>
    %10 = vector.extract_strided_slice %5 {offsets = [0, 384], sizes = [8, 128], strides = [1, 1]} : vector<8x512xf32> to vector<8x128xf32>
    %c0_7 = arith.constant 0 : index
    %c0_8 = arith.constant 0 : index
    %11 = vector.load %arg5[%c0_7, %c0_8] : memref<8x128xf32, #tpu.memory_space<vmem>>, vector<1x128xf32>
    %c1 = arith.constant 1 : index
    %c0_9 = arith.constant 0 : index
    %12 = vector.load %arg5[%c1, %c0_9] : memref<8x128xf32, #tpu.memory_space<vmem>>, vector<1x128xf32>
    %c2 = arith.constant 2 : index
    %c0_10 = arith.constant 0 : index
    %13 = vector.load %arg5[%c2, %c0_10] : memref<8x128xf32, #tpu.memory_space<vmem>>, vector<1x128xf32>
    %14 = vector.broadcast %11 : vector<1x128xf32> to vector<8x128xf32>
    %15 = arith.mulf %14, %6 : vector<8x128xf32>
    %16 = arith.addf %9, %15 : vector<8x128xf32>
    %cst_11 = arith.constant 5.000000e-01 : f32
    %17 = vector.broadcast %cst_11 : f32 to vector<8x128xf32>
    %18 = arith.mulf %17, %16 : vector<8x128xf32>
    %19 = math.tanh %18 : vector<8x128xf32>
    %cst_12 = arith.constant 5.000000e-01 : f32
    %20 = vector.broadcast %cst_12 : f32 to vector<8x128xf32>
    %21 = arith.mulf %20, %19 : vector<8x128xf32>
    %cst_13 = arith.constant 5.000000e-01 : f32
    %22 = vector.broadcast %cst_13 : f32 to vector<8x128xf32>
    %23 = arith.addf %21, %22 : vector<8x128xf32>
    %24 = arith.mulf %23, %6 : vector<8x128xf32>
    %25 = vector.broadcast %12 : vector<1x128xf32> to vector<8x128xf32>
    %26 = arith.mulf %25, %6 : vector<8x128xf32>
    %27 = arith.addf %7, %26 : vector<8x128xf32>
    %cst_14 = arith.constant 5.000000e-01 : f32
    %28 = vector.broadcast %cst_14 : f32 to vector<8x128xf32>
    %29 = arith.mulf %28, %27 : vector<8x128xf32>
    %30 = math.tanh %29 : vector<8x128xf32>
    %cst_15 = arith.constant 5.000000e-01 : f32
    %31 = vector.broadcast %cst_15 : f32 to vector<8x128xf32>
    %32 = arith.mulf %31, %30 : vector<8x128xf32>
    %cst_16 = arith.constant 5.000000e-01 : f32
    %33 = vector.broadcast %cst_16 : f32 to vector<8x128xf32>
    %34 = arith.addf %32, %33 : vector<8x128xf32>
    %35 = math.tanh %8 : vector<8x128xf32>
    %36 = arith.mulf %34, %35 : vector<8x128xf32>
    %37 = arith.addf %24, %36 : vector<8x128xf32>
    %38 = vector.broadcast %13 : vector<1x128xf32> to vector<8x128xf32>
    %39 = arith.mulf %38, %37 : vector<8x128xf32>
    %40 = arith.addf %10, %39 : vector<8x128xf32>
    %cst_17 = arith.constant 5.000000e-01 : f32
    %41 = vector.broadcast %cst_17 : f32 to vector<8x128xf32>
    %42 = arith.mulf %41, %40 : vector<8x128xf32>
    %43 = math.tanh %42 : vector<8x128xf32>
    %cst_18 = arith.constant 5.000000e-01 : f32
    %44 = vector.broadcast %cst_18 : f32 to vector<8x128xf32>
    %45 = arith.mulf %44, %43 : vector<8x128xf32>
    %cst_19 = arith.constant 5.000000e-01 : f32
    %46 = vector.broadcast %cst_19 : f32 to vector<8x128xf32>
    %47 = arith.addf %45, %46 : vector<8x128xf32>
    %48 = math.tanh %37 : vector<8x128xf32>
    %49 = arith.mulf %47, %48 : vector<8x128xf32>
    %50 = arith.truncf %49 : vector<8x128xf32> to vector<8x128xbf16>
    %c0_20 = arith.constant 0 : index
    %c0_21 = arith.constant 0 : index
    %51 = vector.load %arg6[%c0_20, %c0_21] : memref<128x128xbf16, #tpu.memory_space<vmem>>, vector<128x128xbf16>
    %cst_22 = arith.constant dense<0.000000e+00> : vector<8x128xf32>
    %52 = tpu.matmul %50, %51, %cst_22 {dimension_numbers = #tpu.dot_dimension_numbers<[1], [0], [0], [1], [0, 0, 1, 1], [], []>} : vector<8x128xbf16>, vector<128x128xbf16>, vector<8x128xf32> -> vector<8x128xf32>
    %c0_23 = arith.constant 0 : index
    %c0_24 = arith.constant 0 : index
    %53 = vector.load %arg7[%c0_23, %c0_24] : memref<8x128xf32, #tpu.memory_space<vmem>>, vector<8x128xf32>
    tpu.vector_store %arg7[%c0_23, %c0_24], %52 {strides = array<i32>} : memref<8x128xf32, #tpu.memory_space<vmem>>, vector<8x128xf32>,
    %c0_25 = arith.constant 0 : index
    %c0_26 = arith.constant 0 : index
    %54 = vector.load %arg8[%c0_25, %c0_26] : memref<8x128xf32, #tpu.memory_space<vmem>>, vector<8x128xf32>
    tpu.vector_store %arg8[%c0_25, %c0_26], %37 {strides = array<i32>} : memref<8x128xf32, #tpu.memory_space<vmem>>, vector<8x128xf32>,
    return
  }
  func.func @transform_0(%arg0: i32) -> (i32, i32) {
    %c0_i32 = arith.constant 0 : i32
    %c0_i32_0 = arith.constant 0 : i32
    return %arg0, %c0_i32 : i32, i32
  }
  func.func @transform_1(%arg0: i32) -> (i32, i32) {
    %c0_i32 = arith.constant 0 : i32
    %c0_i32_0 = arith.constant 0 : i32
    return %arg0, %c0_i32 : i32, i32
  }
  func.func @transform_2(%arg0: i32) -> (i32, i32) {
    %c0_i32 = arith.constant 0 : i32
    %c0_i32_0 = arith.constant 0 : i32
    %c0_i32_1 = arith.constant 0 : i32
    return %c0_i32, %c0_i32_0 : i32, i32
  }
  func.func @transform_3(%arg0: i32) -> (i32, i32) {
    %c0_i32 = arith.constant 0 : i32
    %c0_i32_0 = arith.constant 0 : i32
    %c0_i32_1 = arith.constant 0 : i32
    return %c0_i32, %c0_i32_0 : i32, i32
  }
  func.func @transform_4(%arg0: i32) -> (i32, i32) {
    %c0_i32 = arith.constant 0 : i32
    %c0_i32_0 = arith.constant 0 : i32
    %c0_i32_1 = arith.constant 0 : i32
    return %c0_i32, %c0_i32_0 : i32, i32
  }
  func.func @transform_5(%arg0: i32) -> (i32, i32) {
    %c0_i32 = arith.constant 0 : i32
    %c0_i32_0 = arith.constant 0 : i32
    %c0_i32_1 = arith.constant 0 : i32
    return %c0_i32, %c0_i32_0 : i32, i32
  }
  func.func @transform_6(%arg0: i32) -> (i32, i32) {
    %c0_i32 = arith.constant 0 : i32
    %c0_i32_0 = arith.constant 0 : i32
    return %arg0, %c0_i32 : i32, i32
  }
  func.func @transform_7(%arg0: i32) -> (i32, i32) {
    %c0_i32 = arith.constant 0 : i32
    %c0_i32_0 = arith.constant 0 : i32
    return %arg0, %c0_i32 : i32, i32
  }
}

</mosaic_0001>

<llo_original>
// kernel: _tf_lstm_cell_impl.1
$region0: #{_tf_lstm_cell_impl.1}
  #allocation0 [shape = 'u32[]', space=smem, size = 0x4, offset = 0x4, fixed_abs, tag = 'smem constant byte address 0x4 - core index']
  #allocation1 [shape = 'u32[144,128]{1,0:T(1,128)}', space=vmem, size = 0x12000, scoped, tag = 'internal scratch']
  %s0 = inlined_call_operand.hbm [shape: bf16[8,256], index: 0, kind: input, shape index: {}]
  %s1 = inlined_call_operand.hbm [shape: f32[8,128], index: 1, kind: input, shape index: {}, may-alias: {1,7}]
  %s2 = inlined_call_operand.hbm [shape: bf16[256,512], index: 2, kind: input, shape index: {}]
  %s3 = inlined_call_operand.hbm [shape: f32[1,512], index: 3, kind: input, shape index: {}]
  %s4 = inlined_call_operand.hbm [shape: f32[8,128], index: 4, kind: input, shape index: {}]
  %s5 = inlined_call_operand.hbm [shape: bf16[128,128], index: 5, kind: input, shape index: {}]
  %s6 = inlined_call_operand.hbm [shape: f32[8,128], index: 6, kind: output, shape index: {0}]
  %s7 = inlined_call_operand.hbm [shape: f32[8,128], index: 7, kind: output, shape index: {1}, may-alias: {1,7}]
  %8 = xla_tuple %s6, %s7
  %s9 = sld [smem:[#allocation0]]
  $region66: #{_tf_lstm_cell_impl.1} parent=0
    _
  %s11 = ssub.s32 1, %s9
  %s12 = scalar_select 0, %s11, %s9
  $region1: #{_tf_lstm_cell_impl.1} parent=0
    #allocation2 [shape = 'u8[4096]{0}', space=vmem, size = 0x1000, scoped, tag = 'input window, operand 0, single buffered']
    #allocation3 [shape = 's32[1]{0}', space=sflag, size = 0x4, scoped, tag = 'scoped memory for _tf_lstm_cell_impl.1']
    #allocation4 [shape = 's32[1]{0}', space=sflag, size = 0x4, scoped, tag = 'scoped memory for _tf_lstm_cell_impl.1']
    #allocation5 [shape = 'u8[4096]{0}', space=vmem, size = 0x1000, scoped, tag = 'input window, operand 1, single buffered']
    #allocation6 [shape = 's32[1]{0}', space=sflag, size = 0x4, scoped, tag = 'scoped memory for _tf_lstm_cell_impl.1']
    #allocation7 [shape = 'u8[262144]{0}', space=vmem, size = 0x40000, scoped, tag = 'input window, operand 2, single buffered']
    #allocation8 [shape = 'u8[2048]{0}', space=vmem, size = 0x800, scoped, tag = 'input window, operand 3, single buffered']
    #allocation9 [shape = 's32[1]{0}', space=sflag, size = 0x4, scoped, tag = 'scoped memory for _tf_lstm_cell_impl.1']
    #allocation10 [shape = 'u8[4096]{0}', space=vmem, size = 0x1000, scoped, tag = 'input window, operand 4, single buffered']
    #allocation11 [shape = 'u8[32768]{0}', space=vmem, size = 0x8000, scoped, tag = 'input window, operand 5, single buffered']
    #allocation12 [shape = 's32[1]{0}', space=sflag, size = 0x4, scoped, tag = 'scoped memory for _tf_lstm_cell_impl.1']
    #allocation13 [shape = 'u8[4096]{0}', space=vmem, size = 0x1000, scoped, tag = 'output window, operand 0, single buffered']
    #allocation14 [shape = 'u8[4096]{0}', space=vmem, size = 0x1000, scoped, tag = 'output window, operand 1, single buffered']
    #allocation15 [shape = 's32[1]{0}', space=sflag, size = 0x4, scoped, tag = 'scoped memory for _tf_lstm_cell_impl.1']
    %13 = vsyncpa [#allocation3], 0
    %14 = vsyncpa [#allocation6], 0
    %15 = vsyncpa [#allocation9], 0
    %16 = vsyncpa [#allocation12], 0
    %17 = vsyncpa [#allocation4], 0
    %18 = vsyncpa [#allocation15], 0
    // Predicated region
    $region2: #{_tf_lstm_cell_impl.1} parent=1 // pred_check
      _
    $region3: #{_tf_lstm_cell_impl.1} parent=1 // pred_check_branch
      %20 = sbr.rel (0) target = $region5
    $region4: #{_tf_lstm_cell_impl.1} parent=1 // pred_region
      %s22 = ssub.s32 128, 128
      %23 = vsyncadd [#allocation3], %s22
      %s25 = sshll.u32 [#allocation2], 4
      %s26 = int_to_ptr.vmem [resolvable:$true] %s25
      %28 = dma.hbm_to_vmem [thread:$0]  %s0, 128, %s26, [#allocation3]
    $region5: #{_tf_lstm_cell_impl.1} parent=1 // pred_fallthru
      _
    // Predicated region
    $region6: #{_tf_lstm_cell_impl.1} parent=1 // pred_check
      _
    $region7: #{_tf_lstm_cell_impl.1} parent=1 // pred_check_branch
      %30 = sbr.rel (0) target = $region9
    $region8: #{_tf_lstm_cell_impl.1} parent=1 // pred_region
      %s32 = ssub.s32 128, 128
      %33 = vsyncadd [#allocation6], %s32
      %s35 = sshll.u32 [#allocation5], 4
      %s36 = int_to_ptr.vmem [resolvable:$true] %s35
      %38 = dma.hbm_to_vmem [thread:$0]  %s1, 128, %s36, [#allocation6]
    $region9: #{_tf_lstm_cell_impl.1} parent=1 // pred_fallthru
      _
    // Predicated region
    $region10: #{_tf_lstm_cell_impl.1} parent=1 // pred_check
      _
    $region11: #{_tf_lstm_cell_impl.1} parent=1 // pred_check_branch
      %40 = sbr.rel (0) target = $region13
    $region12: #{_tf_lstm_cell_impl.1} parent=1 // pred_region
      %s42 = ssub.s32 8192, 8192
      %43 = vsyncadd [#allocation6], %s42
      %s44 = sshll.u32 [#allocation7], 4
      %s45 = int_to_ptr.vmem [resolvable:$true] %s44
      %50 = dma.hbm_to_vmem [thread:$0]  %s2, 8192, %s45, [#allocation6], 256, 256, 16
    $region13: #{_tf_lstm_cell_impl.1} parent=1 // pred_fallthru
      _
    // Predicated region
    $region14: #{_tf_lstm_cell_impl.1} parent=1 // pred_check
      _
    $region15: #{_tf_lstm_cell_impl.1} parent=1 // pred_check_branch
      %52 = sbr.rel (0) target = $region17
    $region16: #{_tf_lstm_cell_impl.1} parent=1 // pred_region
      %s54 = ssub.s32 64, 64
      %55 = vsyncadd [#allocation9], %s54
      %s57 = sshll.u32 [#allocation8], 4
      %s58 = int_to_ptr.vmem [resolvable:$true] %s57
      %60 = dma.hbm_to_vmem [thread:$0]  %s3, 64, %s58, [#allocation9]
    $region17: #{_tf_lstm_cell_impl.1} parent=1 // pred_fallthru
      _
    // Predicated region
    $region18: #{_tf_lstm_cell_impl.1} parent=1 // pred_check
      _
    $region19: #{_tf_lstm_cell_impl.1} parent=1 // pred_check_branch
      %62 = sbr.rel (0) target = $region21
    $region20: #{_tf_lstm_cell_impl.1} parent=1 // pred_region
      %s64 = ssub.s32 128, 128
      %65 = vsyncadd [#allocation9], %s64
      %s67 = sshll.u32 [#allocation10], 4
      %s68 = int_to_ptr.vmem [resolvable:$true] %s67
      %70 = dma.hbm_to_vmem [thread:$0]  %s4, 128, %s68, [#allocation9]
    $region21: #{_tf_lstm_cell_impl.1} parent=1 // pred_fallthru
      _
    // Predicated region
    $region22: #{_tf_lstm_cell_impl.1} parent=1 // pred_check
      _
    $region23: #{_tf_lstm_cell_impl.1} parent=1 // pred_check_branch
      %72 = sbr.rel (0) target = $region25
    $region24: #{_tf_lstm_cell_impl.1} parent=1 // pred_region
      %s74 = ssub.s32 1024, 1024
      %75 = vsyncadd [#allocation12], %s74
      %s76 = sshll.u32 [#allocation11], 4
      %s77 = int_to_ptr.vmem [resolvable:$true] %s76
      %82 = dma.hbm_to_vmem [thread:$0]  %s5, 1024, %s77, [#allocation12], 64, 64, 4
    $region25: #{_tf_lstm_cell_impl.1} parent=1 // pred_fallthru
      _
    // Predicated region
    $region26: #{_tf_lstm_cell_impl.1} parent=1 // pred_check
      _
    $region27: #{_tf_lstm_cell_impl.1} parent=1 // pred_check_branch
      %84 = sbr.rel (0) target = $region29
    $region28: #{_tf_lstm_cell_impl.1} parent=1 // pred_region
      %85 = dma.done [#allocation3], 128
    $region29: #{_tf_lstm_cell_impl.1} parent=1 // pred_fallthru
      _
    // Predicated region
    $region30: #{_tf_lstm_cell_impl.1} parent=1 // pred_check
      _
    $region31: #{_tf_lstm_cell_impl.1} parent=1 // pred_check_branch
      %87 = sbr.rel (0) target = $region33
    $region32: #{_tf_lstm_cell_impl.1} parent=1 // pred_region
      %88 = dma.done [#allocation6], 128
    $region33: #{_tf_lstm_cell_impl.1} parent=1 // pred_fallthru
      _
    // Predicated region
    $region34: #{_tf_lstm_cell_impl.1} parent=1 // pred_check
      _
    $region35: #{_tf_lstm_cell_impl.1} parent=1 // pred_check_branch
      %90 = sbr.rel (0) target = $region37
    $region36: #{_tf_lstm_cell_impl.1} parent=1 // pred_region
      %91 = dma.done [#allocation6], 8192
    $region37: #{_tf_lstm_cell_impl.1} parent=1 // pred_fallthru
      _
    // Predicated region
    $region38: #{_tf_lstm_cell_impl.1} parent=1 // pred_check
      _
    $region39: #{_tf_lstm_cell_impl.1} parent=1 // pred_check_branch
      %93 = sbr.rel (0) target = $region41
    $region40: #{_tf_lstm_cell_impl.1} parent=1 // pred_region
      %94 = dma.done [#allocation9], 64
    $region41: #{_tf_lstm_cell_impl.1} parent=1 // pred_fallthru
      _
    // Predicated region
    $region42: #{_tf_lstm_cell_impl.1} parent=1 // pred_check
      _
    $region43: #{_tf_lstm_cell_impl.1} parent=1 // pred_check_branch
      %96 = sbr.rel (0) target = $region45
    $region44: #{_tf_lstm_cell_impl.1} parent=1 // pred_region
      %97 = dma.done [#allocation9], 128
    $region45: #{_tf_lstm_cell_impl.1} parent=1 // pred_fallthru
      _
    // Predicated region
    $region46: #{_tf_lstm_cell_impl.1} parent=1 // pred_check
      _
    $region47: #{_tf_lstm_cell_impl.1} parent=1 // pred_check_branch
      %99 = sbr.rel (0) target = $region49
    $region48: #{_tf_lstm_cell_impl.1} parent=1 // pred_region
      %100 = dma.done [#allocation12], 1024
    $region49: #{_tf_lstm_cell_impl.1} parent=1 // pred_fallthru
      _
    %v102 = vld [vmem:[#allocation2] sm:$0xff]
    %v103 = vld [vmem:[#allocation7] sm:$0xff]
    %v104 = vld [vmem:[#allocation7 + $0x8] sm:$0xff]
    %v105 = vld [vmem:[#allocation7 + $0x10] sm:$0xff]
    %v106 = vld [vmem:[#allocation7 + $0x18] sm:$0xff]
    %v107 = vld [vmem:[#allocation7 + $0x20] sm:$0xff]
    %v108 = vld [vmem:[#allocation7 + $0x28] sm:$0xff]
    %v109 = vld [vmem:[#allocation7 + $0x30] sm:$0xff]
    %v110 = vld [vmem:[#allocation7 + $0x38] sm:$0xff]
    %v111 = vld [vmem:[#allocation7 + $0x40] sm:$0xff]
    %v112 = vld [vmem:[#allocation7 + $0x48] sm:$0xff]
    %v113 = vld [vmem:[#allocation7 + $0x50] sm:$0xff]
    %v114 = vld [vmem:[#allocation7 + $0x58] sm:$0xff]
    %v115 = vld [vmem:[#allocation7 + $0x60] sm:$0xff]
    %v116 = vld [vmem:[#allocation7 + $0x68] sm:$0xff]
    %v117 = vld [vmem:[#allocation7 + $0x70] sm:$0xff]
    %v118 = vld [vmem:[#allocation7 + $0x78] sm:$0xff]
    %v119 = vld [vmem:[#allocation7 + $0x80] sm:$0xff]
    %v120 = vld [vmem:[#allocation7 + $0x88] sm:$0xff]
    %v121 = vld [vmem:[#allocation7 + $0x90] sm:$0xff]
    %v122 = vld [vmem:[#allocation7 + $0x98] sm:$0xff]
    %v123 = vld [vmem:[#allocation7 + $0xa0] sm:$0xff]
    %v124 = vld [vmem:[#allocation7 + $0xa8] sm:$0xff]
    %v125 = vld [vmem:[#allocation7 + $0xb0] sm:$0xff]
    %v126 = vld [vmem:[#allocation7 + $0xb8] sm:$0xff]
    %v127 = vld [vmem:[#allocation7 + $0xc0] sm:$0xff]
    %v128 = vld [vmem:[#allocation7 + $0xc8] sm:$0xff]
    %v129 = vld [vmem:[#allocation7 + $0xd0] sm:$0xff]
    %v130 = vld [vmem:[#allocation7 + $0xd8] sm:$0xff]
    %v131 = vld [vmem:[#allocation7 + $0xe0] sm:$0xff]
    %v132 = vld [vmem:[#allocation7 + $0xe8] sm:$0xff]
    %v133 = vld [vmem:[#allocation7 + $0xf0] sm:$0xff]
    %v134 = vld [vmem:[#allocation7 + $0xf8] sm:$0xff]
    %v135 = vld [vmem:[#allocation7 + $0x100] sm:$0xff]
    %v136 = vld [vmem:[#allocation7 + $0x108] sm:$0xff]
    %v137 = vld [vmem:[#allocation7 + $0x110] sm:$0xff]
    %v138 = vld [vmem:[#allocation7 + $0x118] sm:$0xff]
    %v139 = vld [vmem:[#allocation7 + $0x120] sm:$0xff]
    %v140 = vld [vmem:[#allocation7 + $0x128] sm:$0xff]
    %v141 = vld [vmem:[#allocation7 + $0x130] sm:$0xff]
    %v142 = vld [vmem:[#allocation7 + $0x138] sm:$0xff]
    %v143 = vld [vmem:[#allocation7 + $0x140] sm:$0xff]
    %v144 = vld [vmem:[#allocation7 + $0x148] sm:$0xff]
    %v145 = vld [vmem:[#allocation7 + $0x150] sm:$0xff]
    %v146 = vld [vmem:[#allocation7 + $0x158] sm:$0xff]
    %v147 = vld [vmem:[#allocation7 + $0x160] sm:$0xff]
    %v148 = vld [vmem:[#allocation7 + $0x168] sm:$0xff]
    %v149 = vld [vmem:[#allocation7 + $0x170] sm:$0xff]
    %v150 = vld [vmem:[#allocation7 + $0x178] sm:$0xff]
    %v151 = vld [vmem:[#allocation7 + $0x180] sm:$0xff]
    %v152 = vld [vmem:[#allocation7 + $0x188] sm:$0xff]
    %v153 = vld [vmem:[#allocation7 + $0x190] sm:$0xff]
    %v154 = vld [vmem:[#allocation7 + $0x198] sm:$0xff]
    %v155 = vld [vmem:[#allocation7 + $0x1a0] sm:$0xff]
    %v156 = vld [vmem:[#allocation7 + $0x1a8] sm:$0xff]
    %v157 = vld [vmem:[#allocation7 + $0x1b0] sm:$0xff]
    %v158 = vld [vmem:[#allocation7 + $0x1b8] sm:$0xff]
    %v159 = vld [vmem:[#allocation7 + $0x1c0] sm:$0xff]
    %v160 = vld [vmem:[#allocation7 + $0x1c8] sm:$0xff]
    %v161 = vld [vmem:[#allocation7 + $0x1d0] sm:$0xff]
    %v162 = vld [vmem:[#allocation7 + $0x1d8] sm:$0xff]
    %v163 = vld [vmem:[#allocation7 + $0x1e0] sm:$0xff]
    %v164 = vld [vmem:[#allocation7 + $0x1e8] sm:$0xff]
    %v165 = vld [vmem:[#allocation7 + $0x1f0] sm:$0xff]
    %v166 = vld [vmem:[#allocation7 + $0x1f8] sm:$0xff]
    %v167 = vld [vmem:[#allocation8] sm:$0xf]
    %v169 = vlaneseq
    %v170 = vshrl.u32 %v169, 7
    %v171 = vsub.s32 0, %v170
    %v172 = vrot.slane %v167, %v171
    %v173 = vlaneseq
    %v174 = vshrl.u32 %v173, 7
    %v175 = vsub.s32 1, %v174
    %v176 = vrot.slane %v167, %v175
    %v177 = vlaneseq
    %v178 = vshrl.u32 %v177, 7
    %v179 = vsub.s32 2, %v178
    %v180 = vrot.slane %v167, %v179
    %v181 = vlaneseq
    %v182 = vshrl.u32 %v181, 7
    %v183 = vsub.s32 3, %v182
    %v184 = vrot.slane %v167, %v183
    %v190 = vunpack.c.l.b16 %v102
    %v191 = vunpack.c.h.b16 %v102
    %v192 = vpack.c.b16 %v190, %v190
    %v193 = vpack.c.b16 %v191, %v191
    %v260 = vunpack.c.l.b16 %v103
    %v261 = vunpack.c.h.b16 %v103
    %v262 = vunpack.c.l.b16 %v104
    %v263 = vunpack.c.h.b16 %v104
    %v264 = vunpack.c.l.b16 %v105
    %v265 = vunpack.c.h.b16 %v105
    %v266 = vunpack.c.l.b16 %v106
    %v267 = vunpack.c.h.b16 %v106
    %v268 = vunpack.c.l.b16 %v107
    %v269 = vunpack.c.h.b16 %v107
    %v270 = vunpack.c.l.b16 %v108
    %v271 = vunpack.c.h.b16 %v108
    %v272 = vunpack.c.l.b16 %v109
    %v273 = vunpack.c.h.b16 %v109
    %v274 = vunpack.c.l.b16 %v110
    %v275 = vunpack.c.h.b16 %v110
    %v276 = vunpack.c.l.b16 %v111
    %v277 = vunpack.c.h.b16 %v111
    %v278 = vunpack.c.l.b16 %v112
    %v279 = vunpack.c.h.b16 %v112
    %v280 = vunpack.c.l.b16 %v113
    %v281 = vunpack.c.h.b16 %v113
    %v282 = vunpack.c.l.b16 %v114
    %v283 = vunpack.c.h.b16 %v114
    %v284 = vunpack.c.l.b16 %v115
    %v285 = vunpack.c.h.b16 %v115
    %v286 = vunpack.c.l.b16 %v116
    %v287 = vunpack.c.h.b16 %v116
    %v288 = vunpack.c.l.b16 %v117
    %v289 = vunpack.c.h.b16 %v117
    %v290 = vunpack.c.l.b16 %v118
    %v291 = vunpack.c.h.b16 %v118
    %v292 = vunpack.c.l.b16 %v119
    %v293 = vunpack.c.h.b16 %v119
    %v294 = vunpack.c.l.b16 %v120
    %v295 = vunpack.c.h.b16 %v120
    %v296 = vunpack.c.l.b16 %v121
    %v297 = vunpack.c.h.b16 %v121
    %v298 = vunpack.c.l.b16 %v122
    %v299 = vunpack.c.h.b16 %v122
    %v300 = vunpack.c.l.b16 %v123
    %v301 = vunpack.c.h.b16 %v123
    %v302 = vunpack.c.l.b16 %v124
    %v303 = vunpack.c.h.b16 %v124
    %v304 = vunpack.c.l.b16 %v125
    %v305 = vunpack.c.h.b16 %v125
    %v306 = vunpack.c.l.b16 %v126
    %v307 = vunpack.c.h.b16 %v126
    %v308 = vunpack.c.l.b16 %v127
    %v309 = vunpack.c.h.b16 %v127
    %v310 = vunpack.c.l.b16 %v128
    %v311 = vunpack.c.h.b16 %v128
    %v312 = vunpack.c.l.b16 %v129
    %v313 = vunpack.c.h.b16 %v129
    %v314 = vunpack.c.l.b16 %v130
    %v315 = vunpack.c.h.b16 %v130
    %v316 = vunpack.c.l.b16 %v131
    %v317 = vunpack.c.h.b16 %v131
    %v318 = vunpack.c.l.b16 %v132
    %v319 = vunpack.c.h.b16 %v132
    %v320 = vunpack.c.l.b16 %v133
    %v321 = vunpack.c.h.b16 %v133
    %v322 = vunpack.c.l.b16 %v134
    %v323 = vunpack.c.h.b16 %v134
    %v324 = vunpack.c.l.b16 %v135
    %v325 = vunpack.c.h.b16 %v135
    %v326 = vunpack.c.l.b16 %v136
    %v327 = vunpack.c.h.b16 %v136
    %v328 = vunpack.c.l.b16 %v137
    %v329 = vunpack.c.h.b16 %v137
    %v330 = vunpack.c.l.b16 %v138
    %v331 = vunpack.c.h.b16 %v138
    %v332 = vunpack.c.l.b16 %v139
    %v333 = vunpack.c.h.b16 %v139
    %v334 = vunpack.c.l.b16 %v140
    %v335 = vunpack.c.h.b16 %v140
    %v336 = vunpack.c.l.b16 %v141
    %v337 = vunpack.c.h.b16 %v141
    %v338 = vunpack.c.l.b16 %v142
    %v339 = vunpack.c.h.b16 %v142
    %v340 = vunpack.c.l.b16 %v143
    %v341 = vunpack.c.h.b16 %v143
    %v342 = vunpack.c.l.b16 %v144
    %v343 = vunpack.c.h.b16 %v144
    %v344 = vunpack.c.l.b16 %v145
    %v345 = vunpack.c.h.b16 %v145
    %v346 = vunpack.c.l.b16 %v146
    %v347 = vunpack.c.h.b16 %v146
    %v348 = vunpack.c.l.b16 %v147
    %v349 = vunpack.c.h.b16 %v147
    %v350 = vunpack.c.l.b16 %v148
    %v351 = vunpack.c.h.b16 %v148
    %v352 = vunpack.c.l.b16 %v149
    %v353 = vunpack.c.h.b16 %v149
    %v354 = vunpack.c.l.b16 %v150
    %v355 = vunpack.c.h.b16 %v150
    %v356 = vunpack.c.l.b16 %v151
    %v357 = vunpack.c.h.b16 %v151
    %v358 = vunpack.c.l.b16 %v152
    %v359 = vunpack.c.h.b16 %v152
    %v360 = vunpack.c.l.b16 %v153
    %v361 = vunpack.c.h.b16 %v153
    %v362 = vunpack.c.l.b16 %v154
    %v363 = vunpack.c.h.b16 %v154
    %v364 = vunpack.c.l.b16 %v155
    %v365 = vunpack.c.h.b16 %v155
    %v366 = vunpack.c.l.b16 %v156
    %v367 = vunpack.c.h.b16 %v156
    %v368 = vunpack.c.l.b16 %v157
    %v369 = vunpack.c.h.b16 %v157
    %v370 = vunpack.c.l.b16 %v158
    %v371 = vunpack.c.h.b16 %v158
    %v372 = vunpack.c.l.b16 %v159
    %v373 = vunpack.c.h.b16 %v159
    %v374 = vunpack.c.l.b16 %v160
    %v375 = vunpack.c.h.b16 %v160
    %v376 = vunpack.c.l.b16 %v161
    %v377 = vunpack.c.h.b16 %v161
    %v378 = vunpack.c.l.b16 %v162
    %v379 = vunpack.c.h.b16 %v162
    %v380 = vunpack.c.l.b16 %v163
    %v381 = vunpack.c.h.b16 %v163
    %v382 = vunpack.c.l.b16 %v164
    %v383 = vunpack.c.h.b16 %v164
    %v384 = vunpack.c.l.b16 %v165
    %v385 = vunpack.c.h.b16 %v165
    %v386 = vunpack.c.l.b16 %v166
    %v387 = vunpack.c.h.b16 %v166
    %v388 = vpack.c.b16 %v264, %v260
    %v389 = vpack.c.b16 %v265, %v261
    %v390 = vpack.c.b16 %v266, %v262
    %v391 = vpack.c.b16 %v267, %v263
    %v392 = vpack.c.b16 %v272, %v268
    %v393 = vpack.c.b16 %v273, %v269
    %v394 = vpack.c.b16 %v274, %v270
    %v395 = vpack.c.b16 %v275, %v271
    %v396 = vpack.c.b16 %v280, %v276
    %v397 = vpack.c.b16 %v281, %v277
    %v398 = vpack.c.b16 %v282, %v278
    %v399 = vpack.c.b16 %v283, %v279
    %v400 = vpack.c.b16 %v288, %v284
    %v401 = vpack.c.b16 %v289, %v285
    %v402 = vpack.c.b16 %v290, %v286
    %v403 = vpack.c.b16 %v291, %v287
    %v404 = vpack.c.b16 %v296, %v292
    %v405 = vpack.c.b16 %v297, %v293
    %v406 = vpack.c.b16 %v298, %v294
    %v407 = vpack.c.b16 %v299, %v295
    %v408 = vpack.c.b16 %v304, %v300
    %v409 = vpack.c.b16 %v305, %v301
    %v410 = vpack.c.b16 %v306, %v302
    %v411 = vpack.c.b16 %v307, %v303
    %v412 = vpack.c.b16 %v312, %v308
    %v413 = vpack.c.b16 %v313, %v309
    %v414 = vpack.c.b16 %v314, %v310
    %v415 = vpack.c.b16 %v315, %v311
    %v416 = vpack.c.b16 %v320, %v316
    %v417 = vpack.c.b16 %v321, %v317
    %v418 = vpack.c.b16 %v322, %v318
    %v419 = vpack.c.b16 %v323, %v319
    %v420 = vpack.c.b16 %v328, %v324
    %v421 = vpack.c.b16 %v329, %v325
    %v422 = vpack.c.b16 %v330, %v326
    %v423 = vpack.c.b16 %v331, %v327
    %v424 = vpack.c.b16 %v336, %v332
    %v425 = vpack.c.b16 %v337, %v333
    %v426 = vpack.c.b16 %v338, %v334
    %v427 = vpack.c.b16 %v339, %v335
    %v428 = vpack.c.b16 %v344, %v340
    %v429 = vpack.c.b16 %v345, %v341
    %v430 = vpack.c.b16 %v346, %v342
    %v431 = vpack.c.b16 %v347, %v343
    %v432 = vpack.c.b16 %v352, %v348
    %v433 = vpack.c.b16 %v353, %v349
    %v434 = vpack.c.b16 %v354, %v350
    %v435 = vpack.c.b16 %v355, %v351
    %v436 = vpack.c.b16 %v360, %v356
    %v437 = vpack.c.b16 %v361, %v357
    %v438 = vpack.c.b16 %v362, %v358
    %v439 = vpack.c.b16 %v363, %v359
    %v440 = vpack.c.b16 %v368, %v364
    %v441 = vpack.c.b16 %v369, %v365
    %v442 = vpack.c.b16 %v370, %v366
    %v443 = vpack.c.b16 %v371, %v367
    %v444 = vpack.c.b16 %v376, %v372
    %v445 = vpack.c.b16 %v377, %v373
    %v446 = vpack.c.b16 %v378, %v374
    %v447 = vpack.c.b16 %v379, %v375
    %v448 = vpack.c.b16 %v384, %v380
    %v449 = vpack.c.b16 %v385, %v381
    %v450 = vpack.c.b16 %v386, %v382
    %v451 = vpack.c.b16 %v387, %v383
    %516 = vmatprep.subr.bf16.mxu0 %v389
    %517 = vmatpush1.bf16.msra.mxu0 %v388
    %518 = vmatprep.subr.bf16.mxu0 %v393
    %519 = vmatpush1.bf16.msra.mxu0 %v392
    %520 = vmatprep.subr.bf16.mxu0 %v397
    %521 = vmatpush1.bf16.msra.mxu0 %v396
    %522 = vmatprep.subr.bf16.mxu0 %v401
    %523 = vmatpush1.bf16.msra.mxu0 %v400
    %524 = vmatprep.subr.bf16.mxu0 %v405
    %525 = vmatpush1.bf16.msra.mxu0 %v404
    %526 = vmatprep.subr.bf16.mxu0 %v409
    %527 = vmatpush1.bf16.msra.mxu0 %v408
    %528 = vmatprep.subr.bf16.mxu0 %v413
    %529 = vmatpush1.bf16.msra.mxu0 %v412
    %530 = vmatprep.subr.bf16.mxu0 %v417
    %531 = vmatpush1.bf16.msra.mxu0 %v416
    %532 = vmatprep.subr.bf16.mxu0 %v421
    %533 = vmatpush1.bf16.msra.mxu0 %v420
    %534 = vmatprep.subr.bf16.mxu0 %v425
    %535 = vmatpush1.bf16.msra.mxu0 %v424
    %536 = vmatprep.subr.bf16.mxu0 %v429
    %537 = vmatpush1.bf16.msra.mxu0 %v428
    %538 = vmatprep.subr.bf16.mxu0 %v433
    %539 = vmatpush1.bf16.msra.mxu0 %v432
    %540 = vmatprep.subr.bf16.mxu0 %v437
    %541 = vmatpush1.bf16.msra.mxu0 %v436
    %542 = vmatprep.subr.bf16.mxu0 %v441
    %543 = vmatpush1.bf16.msra.mxu0 %v440
    %544 = vmatprep.subr.bf16.mxu0 %v445
    %545 = vmatpush1.bf16.msra.mxu0 %v444
    %546 = vmatprep.subr.bf16.mxu0 %v449
    %547 = vmatpush1.bf16.msra.mxu0 %v448
    %548 = vmatprep.mubr.bf16.mxu0 %v193
    %549 = vmatmul.mubr.bf16.gmra.mrb[0].mxu0 %v192
    %v550 = vpop.f32.mrb[0].mxu0
    %v551 = vadd.f32 %v172, %v550
    %v552 = vpop.f32.mrb[0].mxu0
    %v553 = vadd.f32 %v176, %v552
    %v554 = vpop.f32.mrb[0].mxu0
    %v555 = vpop.f32.mrb[0].mxu0
    %556 = vdwg.mxu0
    %557 = vmatprep.subr.bf16.mxu0 %v391
    %558 = vmatpush1.bf16.msra.mxu0 %v390
    %559 = vmatprep.subr.bf16.mxu0 %v395
    %560 = vmatpush1.bf16.msra.mxu0 %v394
    %561 = vmatprep.subr.bf16.mxu0 %v399
    %562 = vmatpush1.bf16.msra.mxu0 %v398
    %563 = vmatprep.subr.bf16.mxu0 %v403
    %564 = vmatpush1.bf16.msra.mxu0 %v402
    %565 = vmatprep.subr.bf16.mxu0 %v407
    %566 = vmatpush1.bf16.msra.mxu0 %v406
    %567 = vmatprep.subr.bf16.mxu0 %v411
    %568 = vmatpush1.bf16.msra.mxu0 %v410
    %569 = vmatprep.subr.bf16.mxu0 %v415
    %570 = vmatpush1.bf16.msra.mxu0 %v414
    %571 = vmatprep.subr.bf16.mxu0 %v419
    %572 = vmatpush1.bf16.msra.mxu0 %v418
    %573 = vmatprep.subr.bf16.mxu0 %v423
    %574 = vmatpush1.bf16.msra.mxu0 %v422
    %575 = vmatprep.subr.bf16.mxu0 %v427
    %576 = vmatpush1.bf16.msra.mxu0 %v426
    %577 = vmatprep.subr.bf16.mxu0 %v431
    %578 = vmatpush1.bf16.msra.mxu0 %v430
    %579 = vmatprep.subr.bf16.mxu0 %v435
    %580 = vmatpush1.bf16.msra.mxu0 %v434
    %581 = vmatprep.subr.bf16.mxu0 %v439
    %582 = vmatpush1.bf16.msra.mxu0 %v438
    %583 = vmatprep.subr.bf16.mxu0 %v443
    %584 = vmatpush1.bf16.msra.mxu0 %v442
    %585 = vmatprep.subr.bf16.mxu0 %v447
    %586 = vmatpush1.bf16.msra.mxu0 %v446
    %587 = vmatprep.subr.bf16.mxu0 %v451
    %588 = vmatpush1.bf16.msra.mxu0 %v450
    %589 = vmatprep.mubr.bf16.mxu0 %v193
    %590 = vmatmul.mubr.bf16.gmra.mrb[0].mxu0 %v192
    %v591 = vpop.f32.mrb[0].mxu0
    %v592 = vadd.f32 %v180, %v591
    %v593 = vpop.f32.mrb[0].mxu0
    %v594 = vadd.f32 %v184, %v593
    %v595 = vpop.f32.mrb[0].mxu0
    %v596 = vpop.f32.mrb[0].mxu0
    %597 = vdwg.mxu0
    %v598 = vld [vmem:[#allocation5] sm:$0xff]
    %v599 = vld [vmem:[#allocation10] sm:$0x1]
    %v600 = vld [vmem:[#allocation10 + $0x1] sm:$0x1]
    %v601 = vld [vmem:[#allocation10 + $0x2] sm:$0x1]
    %v602 = vlaneseq
    %v603 = vshrl.u32 %v602, 7
    %v604 = vsub.s32 0, %v603
    %v605 = vrot.slane %v599, %v604
    %v606 = vmul.f32 %v605, %v598
    %v607 = vadd.f32 %v592, %v606
    %v608 = vmul.f32 %v607, 0.5
    %v609 = vtanh.pop %v608
    %v610 = vmul.f32 %v609, 0.5
    %v611 = vadd.f32 %v610, 0.5
    %v612 = vmul.f32 %v611, %v598
    %v613 = vlaneseq
    %v614 = vshrl.u32 %v613, 7
    %v615 = vsub.s32 0, %v614
    %v616 = vrot.slane %v600, %v615
    %v617 = vmul.f32 %v616, %v598
    %v618 = vadd.f32 %v551, %v617
    %v619 = vmul.f32 %v618, 0.5
    %v620 = vtanh.pop %v619
    %v621 = vmul.f32 %v620, 0.5
    %v622 = vadd.f32 %v621, 0.5
    %v623 = vtanh.pop %v553
    %v624 = vmul.f32 %v622, %v623
    %v625 = vadd.f32 %v612, %v624
    %v626 = vlaneseq
    %v627 = vshrl.u32 %v626, 7
    %v628 = vsub.s32 0, %v627
    %v629 = vrot.slane %v601, %v628
    %v630 = vmul.f32 %v629, %v625
    %v631 = vadd.f32 %v594, %v630
    %v632 = vmul.f32 %v631, 0.5
    %v633 = vtanh.pop %v632
    %v634 = vmul.f32 %v633, 0.5
    %v635 = vadd.f32 %v634, 0.5
    %v636 = vtanh.pop %v625
    %v637 = vmul.f32 %v635, %v636
    %v638 = vpack.c.bf16 %v637, %v637
    %v639 = vld [vmem:[#allocation11] sm:$0xf]
    %v640 = vld [vmem:[#allocation11 + $0x4] sm:$0xf]
    %v641 = vld [vmem:[#allocation11 + $0x8] sm:$0xf]
    %v642 = vld [vmem:[#allocation11 + $0xc] sm:$0xf]
    %v643 = vld [vmem:[#allocation11 + $0x10] sm:$0xf]
    %v644 = vld [vmem:[#allocation11 + $0x14] sm:$0xf]
    %v645 = vld [vmem:[#allocation11 + $0x18] sm:$0xf]
    %v646 = vld [vmem:[#allocation11 + $0x1c] sm:$0xf]
    %v647 = vld [vmem:[#allocation11 + $0x20] sm:$0xf]
    %v648 = vld [vmem:[#allocation11 + $0x24] sm:$0xf]
    %v649 = vld [vmem:[#allocation11 + $0x28] sm:$0xf]
    %v650 = vld [vmem:[#allocation11 + $0x2c] sm:$0xf]
    %v651 = vld [vmem:[#allocation11 + $0x30] sm:$0xf]
    %v652 = vld [vmem:[#allocation11 + $0x34] sm:$0xf]
    %v653 = vld [vmem:[#allocation11 + $0x38] sm:$0xf]
    %v654 = vld [vmem:[#allocation11 + $0x3c] sm:$0xf]
    %v671 = vunpack.c.l.b16 %v639
    %v672 = vunpack.c.l.b16 %v640
    %v673 = vunpack.c.l.b16 %v641
    %v674 = vunpack.c.l.b16 %v642
    %v675 = vunpack.c.l.b16 %v643
    %v676 = vunpack.c.l.b16 %v644
    %v677 = vunpack.c.l.b16 %v645
    %v678 = vunpack.c.l.b16 %v646
    %v679 = vunpack.c.l.b16 %v647
    %v680 = vunpack.c.l.b16 %v648
    %v681 = vunpack.c.l.b16 %v649
    %v682 = vunpack.c.l.b16 %v650
    %v683 = vunpack.c.l.b16 %v651
    %v684 = vunpack.c.l.b16 %v652
    %v685 = vunpack.c.l.b16 %v653
    %v686 = vunpack.c.l.b16 %v654
    %v687 = vpack.c.b16 %v672, %v671
    %v688 = vpack.c.b16 %v674, %v673
    %v689 = vpack.c.b16 %v676, %v675
    %v690 = vpack.c.b16 %v678, %v677
    %v691 = vpack.c.b16 %v680, %v679
    %v692 = vpack.c.b16 %v682, %v681
    %v693 = vpack.c.b16 %v684, %v683
    %v694 = vpack.c.b16 %v686, %v685
    %703 = vmatprep.subr.bf16.mxu0 0
    %704 = vmatpush1.bf16.msra.mxu0 %v687
    %705 = vmatprep.subr.bf16.mxu0 0
    %706 = vmatpush1.bf16.msra.mxu0 %v688
    %707 = vmatprep.subr.bf16.mxu0 0
    %708 = vmatpush1.bf16.msra.mxu0 %v689
    %709 = vmatprep.subr.bf16.mxu0 0
    %710 = vmatpush1.bf16.msra.mxu0 %v690
    %711 = vmatprep.subr.bf16.mxu0 0
    %712 = vmatpush1.bf16.msra.mxu0 %v691
    %713 = vmatprep.subr.bf16.mxu0 0
    %714 = vmatpush1.bf16.msra.mxu0 %v692
    %715 = vmatprep.subr.bf16.mxu0 0
    %716 = vmatpush1.bf16.msra.mxu0 %v693
    %717 = vmatprep.subr.bf16.mxu0 0
    %718 = vmatpush1.bf16.msra.mxu0 %v694
    %719 = vmatprep.subr.bf16.mxu0 0
    %720 = vmatpush1.bf16.msra.mxu0 0
    %721 = vmatprep.subr.bf16.mxu0 0
    %722 = vmatpush1.bf16.msra.mxu0 0
    %723 = vmatprep.subr.bf16.mxu0 0
    %724 = vmatpush1.bf16.msra.mxu0 0
    %725 = vmatprep.subr.bf16.mxu0 0
    %726 = vmatpush1.bf16.msra.mxu0 0
    %727 = vmatprep.subr.bf16.mxu0 0
    %728 = vmatpush1.bf16.msra.mxu0 0
    %729 = vmatprep.subr.bf16.mxu0 0
    %730 = vmatpush1.bf16.msra.mxu0 0
    %731 = vmatprep.subr.bf16.mxu0 0
    %732 = vmatpush1.bf16.msra.mxu0 0
    %733 = vmatprep.subr.bf16.mxu0 0
    %734 = vmatpush1.bf16.msra.mxu0 0
    %735 = vmatprep.mubr.bf16.mxu0 0
    %736 = vmatmul.mubr.bf16.gmra.mrb[0].mxu0 %v638
    %v737 = vpop.f32.mrb[0].mxu0
    %v738 = vadd.f32 0.0, %v737
    %v739 = vpop.f32.mrb[0].mxu0
    %v740 = vpop.f32.mrb[0].mxu0
    %v741 = vpop.f32.mrb[0].mxu0
    %742 = vdwg.mxu0
    %743 = vst [vmem:[#allocation13] sm:$0xff] %v738
    %744 = vst [vmem:[#allocation14] sm:$0xff] %v625
    // Predicated region
    $region50: #{_tf_lstm_cell_impl.1} parent=1 // pred_check
      _
    $region51: #{_tf_lstm_cell_impl.1} parent=1 // pred_check_branch
      %746 = sbr.rel (0) target = $region53
    $region52: #{_tf_lstm_cell_impl.1} parent=1 // pred_region
      %s748 = ssub.s32 128, 128
      %749 = vsyncadd [#allocation4], %s748
      %s751 = sshll.u32 [#allocation13], 4
      %s752 = int_to_ptr.vmem [resolvable:$true] %s751
      %754 = dma.vmem_to_hbm [thread:$0]  %s752, 128, %s6, [#allocation4]
    $region53: #{_tf_lstm_cell_impl.1} parent=1 // pred_fallthru
      _
    // Predicated region
    $region54: #{_tf_lstm_cell_impl.1} parent=1 // pred_check
      _
    $region55: #{_tf_lstm_cell_impl.1} parent=1 // pred_check_branch
      %756 = sbr.rel (0) target = $region57
    $region56: #{_tf_lstm_cell_impl.1} parent=1 // pred_region
      %s758 = ssub.s32 128, 128
      %759 = vsyncadd [#allocation15], %s758
      %s761 = sshll.u32 [#allocation14], 4
      %s762 = int_to_ptr.vmem [resolvable:$true] %s761
      %764 = dma.vmem_to_hbm [thread:$0]  %s762, 128, %s7, [#allocation15]
    $region57: #{_tf_lstm_cell_impl.1} parent=1 // pred_fallthru
      _
    // Predicated region
    $region58: #{_tf_lstm_cell_impl.1} parent=1 // pred_check
      _
    $region59: #{_tf_lstm_cell_impl.1} parent=1 // pred_check_branch
      %766 = sbr.rel (0) target = $region61
    $region60: #{_tf_lstm_cell_impl.1} parent=1 // pred_region
      %767 = dma.done [#allocation4], 128
    $region61: #{_tf_lstm_cell_impl.1} parent=1 // pred_fallthru
      _
    // Predicated region
    $region62: #{_tf_lstm_cell_impl.1} parent=1 // pred_check
      _
    $region63: #{_tf_lstm_cell_impl.1} parent=1 // pred_check_branch
      %769 = sbr.rel (0) target = $region65
    $region64: #{_tf_lstm_cell_impl.1} parent=1 // pred_region
      %770 = dma.done [#allocation15], 128
    $region65: #{_tf_lstm_cell_impl.1} parent=1 // pred_fallthru
      _
    %771 = vsyncpa [#allocation3], 1
    %772 = vsyncpa [#allocation6], 1
    %773 = vsyncpa [#allocation9], 1
    %774 = vsyncpa [#allocation12], 1
    %775 = vsyncpa [#allocation4], 1
    %776 = vsyncpa [#allocation15], 1

// kernel: _tf_lstm_cell_impl.1
$region0: #{_tf_lstm_cell_impl.1}
  #allocation0 [shape = 'u32[]', space=smem, size = 0x4, offset = 0x4, fixed_abs, tag = 'smem constant byte address 0x4 - core index']
  #allocation1 [shape = 'u32[144,128]{1,0:T(1,128)}', space=vmem, size = 0x12000, scoped, tag = 'internal scratch']
  %s0 = inlined_call_operand.hbm [shape: bf16[8,256], index: 0, kind: input, shape index: {}]
  %s1 = inlined_call_operand.hbm [shape: f32[8,128], index: 1, kind: input, shape index: {}, may-alias: {1,7}]
  %s2 = inlined_call_operand.hbm [shape: bf16[256,512], index: 2, kind: input, shape index: {}]
  %s3 = inlined_call_operand.hbm [shape: f32[1,512], index: 3, kind: input, shape index: {}]
  %s4 = inlined_call_operand.hbm [shape: f32[8,128], index: 4, kind: input, shape index: {}]
  %s5 = inlined_call_operand.hbm [shape: bf16[128,128], index: 5, kind: input, shape index: {}]
  %s6 = inlined_call_operand.hbm [shape: f32[8,128], index: 6, kind: output, shape index: {0}]
  %s7 = inlined_call_operand.hbm [shape: f32[8,128], index: 7, kind: output, shape index: {1}, may-alias: {1,7}]
  %8 = xla_tuple %s6, %s7
  %s9 = sld [smem:[#allocation0]]
  $region66: #{_tf_lstm_cell_impl.1} parent=0
    _
  %s11 = ssub.s32 1, %s9
  %s12 = scalar_select 0, %s11, %s9
  $region1: #{_tf_lstm_cell_impl.1} parent=0
    #allocation2 [shape = 'u8[4096]{0}', space=vmem, size = 0x1000, scoped, tag = 'input window, operand 0, single buffered']
    #allocation3 [shape = 's32[1]{0}', space=sflag, size = 0x4, scoped, tag = 'scoped memory for _tf_lstm_cell_impl.1']
    #allocation4 [shape = 's32[1]{0}', space=sflag, size = 0x4, scoped, tag = 'scoped memory for _tf_lstm_cell_impl.1']
    #allocation5 [shape = 'u8[4096]{0}', space=vmem, size = 0x1000, scoped, tag = 'input window, operand 1, single buffered']
    #allocation6 [shape = 's32[1]{0}', space=sflag, size = 0x4, scoped, tag = 'scoped memory for _tf_lstm_cell_impl.1']
    #allocation7 [shape = 'u8[262144]{0}', space=vmem, size = 0x40000, scoped, tag = 'input window, operand 2, single buffered']
    #allocation8 [shape = 'u8[2048]{0}', space=vmem, size = 0x800, scoped, tag = 'input window, operand 3, single buffered']
    #allocation9 [shape = 's32[1]{0}', space=sflag, size = 0x4, scoped, tag = 'scoped memory for _tf_lstm_cell_impl.1']
    #allocation10 [shape = 'u8[4096]{0}', space=vmem, size = 0x1000, scoped, tag = 'input window, operand 4, single buffered']
    #allocation11 [shape = 'u8[32768]{0}', space=vmem, size = 0x8000, scoped, tag = 'input window, operand 5, single buffered']
    #allocation12 [shape = 's32[1]{0}', space=sflag, size = 0x4, scoped, tag = 'scoped memory for _tf_lstm_cell_impl.1']
    #allocation13 [shape = 'u8[4096]{0}', space=vmem, size = 0x1000, scoped, tag = 'output window, operand 0, single buffered']
    #allocation14 [shape = 'u8[4096]{0}', space=vmem, size = 0x1000, scoped, tag = 'output window, operand 1, single buffered']
    #allocation15 [shape = 's32[1]{0}', space=sflag, size = 0x4, scoped, tag = 'scoped memory for _tf_lstm_cell_impl.1']
    %13 = vsyncpa [#allocation3], 0
    %14 = vsyncpa [#allocation6], 0
    %15 = vsyncpa [#allocation9], 0
    %16 = vsyncpa [#allocation12], 0
    %17 = vsyncpa [#allocation4], 0
    %18 = vsyncpa [#allocation15], 0
    // Predicated region
    $region2: #{_tf_lstm_cell_impl.1} parent=1 // pred_check
      _
    $region3: #{_tf_lstm_cell_impl.1} parent=1 // pred_check_branch
      %20 = sbr.rel (0) target = $region5
    $region4: #{_tf_lstm_cell_impl.1} parent=1 // pred_region
      %s22 = ssub.s32 128, 128
      %23 = vsyncadd [#allocation3], %s22
      %s25 = sshll.u32 [#allocation2], 4
      %s26 = int_to_ptr.vmem [resolvable:$true] %s25
      %28 = dma.hbm_to_vmem [thread:$0]  %s0, 128, %s26, [#allocation3]
    $region5: #{_tf_lstm_cell_impl.1} parent=1 // pred_fallthru
      _
    // Predicated region
    $region6: #{_tf_lstm_cell_impl.1} parent=1 // pred_check
      _
    $region7: #{_tf_lstm_cell_impl.1} parent=1 // pred_check_branch
      %30 = sbr.rel (0) target = $region9
    $region8: #{_tf_lstm_cell_impl.1} parent=1 // pred_region
      %s32 = ssub.s32 128, 128
      %33 = vsyncadd [#allocation6], %s32
      %s35 = sshll.u32 [#allocation5], 4
      %s36 = int_to_ptr.vmem [resolvable:$true] %s35
      %38 = dma.hbm_to_vmem [thread:$0]  %s1, 128, %s36, [#allocation6]
    $region9: #{_tf_lstm_cell_impl.1} parent=1 // pred_fallthru
      _
    // Predicated region
    $region10: #{_tf_lstm_cell_impl.1} parent=1 // pred_check
      _
    $region11: #{_tf_lstm_cell_impl.1} parent=1 // pred_check_branch
      %40 = sbr.rel (0) target = $region13
    $region12: #{_tf_lstm_cell_impl.1} parent=1 // pred_region
      %s42 = ssub.s32 8192, 8192
      %43 = vsyncadd [#allocation6], %s42
      %s44 = sshll.u32 [#allocation7], 4
      %s45 = int_to_ptr.vmem [resolvable:$true] %s44
      %50 = dma.hbm_to_vmem [thread:$0]  %s2, 8192, %s45, [#allocation6], 256, 256, 16
    $region13: #{_tf_lstm_cell_impl.1} parent=1 // pred_fallthru
      _
    // Predicated region
    $region14: #{_tf_lstm_cell_impl.1} parent=1 // pred_check
      _
    $region15: #{_tf_lstm_cell_impl.1} parent=1 // pred_check_branch
      %52 = sbr.rel (0) target = $region17
    $region16: #{_tf_lstm_cell_impl.1} parent=1 // pred_region
      %s54 = ssub.s32 64, 64
      %55 = vsyncadd [#allocation9], %s54
      %s57 = sshll.u32 [#allocation8], 4
      %s58 = int_to_ptr.vmem [resolvable:$true] %s57
      %60 = dma.hbm_to_vmem [thread:$0]  %s3, 64, %s58, [#allocation9]
    $region17: #{_tf_lstm_cell_impl.1} parent=1 // pred_fallthru
      _
    // Predicated region
    $region18: #{_tf_lstm_cell_impl.1} parent=1 // pred_check
      _
    $region19: #{_tf_lstm_cell_impl.1} parent=1 // pred_check_branch
      %62 = sbr.rel (0) target = $region21
    $region20: #{_tf_lstm_cell_impl.1} parent=1 // pred_region
      %s64 = ssub.s32 128, 128
      %65 = vsyncadd [#allocation9], %s64
      %s67 = sshll.u32 [#allocation10], 4
      %s68 = int_to_ptr.vmem [resolvable:$true] %s67
      %70 = dma.hbm_to_vmem [thread:$0]  %s4, 128, %s68, [#allocation9]
    $region21: #{_tf_lstm_cell_impl.1} parent=1 // pred_fallthru
      _
    // Predicated region
    $region22: #{_tf_lstm_cell_impl.1} parent=1 // pred_check
      _
    $region23: #{_tf_lstm_cell_impl.1} parent=1 // pred_check_branch
      %72 = sbr.rel (0) target = $region25
    $region24: #{_tf_lstm_cell_impl.1} parent=1 // pred_region
      %s74 = ssub.s32 1024, 1024
      %75 = vsyncadd [#allocation12], %s74
      %s76 = sshll.u32 [#allocation11], 4
      %s77 = int_to_ptr.vmem [resolvable:$true] %s76
      %82 = dma.hbm_to_vmem [thread:$0]  %s5, 1024, %s77, [#allocation12], 64, 64, 4
    $region25: #{_tf_lstm_cell_impl.1} parent=1 // pred_fallthru
      _
    // Predicated region
    $region26: #{_tf_lstm_cell_impl.1} parent=1 // pred_check
      _
    $region27: #{_tf_lstm_cell_impl.1} parent=1 // pred_check_branch
      %84 = sbr.rel (0) target = $region29
    $region28: #{_tf_lstm_cell_impl.1} parent=1 // pred_region
      %85 = dma.done [#allocation3], 128
    $region29: #{_tf_lstm_cell_impl.1} parent=1 // pred_fallthru
      _
    // Predicated region
    $region30: #{_tf_lstm_cell_impl.1} parent=1 // pred_check
      _
    $region31: #{_tf_lstm_cell_impl.1} parent=1 // pred_check_branch
      %87 = sbr.rel (0) target = $region33
    $region32: #{_tf_lstm_cell_impl.1} parent=1 // pred_region
      %88 = dma.done [#allocation6], 128
    $region33: #{_tf_lstm_cell_impl.1} parent=1 // pred_fallthru
      _
    // Predicated region
    $region34: #{_tf_lstm_cell_impl.1} parent=1 // pred_check
      _
    $region35: #{_tf_lstm_cell_impl.1} parent=1 // pred_check_branch
      %90 = sbr.rel (0) target = $region37
    $region36: #{_tf_lstm_cell_impl.1} parent=1 // pred_region
      %91 = dma.done [#allocation6], 8192
    $region37: #{_tf_lstm_cell_impl.1} parent=1 // pred_fallthru
      _
    // Predicated region
    $region38: #{_tf_lstm_cell_impl.1} parent=1 // pred_check
      _
    $region39: #{_tf_lstm_cell_impl.1} parent=1 // pred_check_branch
      %93 = sbr.rel (0) target = $region41
    $region40: #{_tf_lstm_cell_impl.1} parent=1 // pred_region
      %94 = dma.done [#allocation9], 64
    $region41: #{_tf_lstm_cell_impl.1} parent=1 // pred_fallthru
      _
    // Predicated region
    $region42: #{_tf_lstm_cell_impl.1} parent=1 // pred_check
      _
    $region43: #{_tf_lstm_cell_impl.1} parent=1 // pred_check_branch
      %96 = sbr.rel (0) target = $region45
    $region44: #{_tf_lstm_cell_impl.1} parent=1 // pred_region
      %97 = dma.done [#allocation9], 128
    $region45: #{_tf_lstm_cell_impl.1} parent=1 // pred_fallthru
      _
    // Predicated region
    $region46: #{_tf_lstm_cell_impl.1} parent=1 // pred_check
      _
    $region47: #{_tf_lstm_cell_impl.1} parent=1 // pred_check_branch
      %99 = sbr.rel (0) target = $region49
    $region48: #{_tf_lstm_cell_impl.1} parent=1 // pred_region
      %100 = dma.done [#allocation12], 1024
    $region49: #{_tf_lstm_cell_impl.1} parent=1 // pred_fallthru
      _
    %v102 = vld [vmem:[#allocation2] sm:$0xff]
    %v103 = vld [vmem:[#allocation7] sm:$0xff]
    %v104 = vld [vmem:[#allocation7 + $0x8] sm:$0xff]
    %v105 = vld [vmem:[#allocation7 + $0x10] sm:$0xff]
    %v106 = vld [vmem:[#allocation7 + $0x18] sm:$0xff]
    %v107 = vld [vmem:[#allocation7 + $0x20] sm:$0xff]
    %v108 = vld [vmem:[#allocation7 + $0x28] sm:$0xff]
    %v109 = vld [vmem:[#allocation7 + $0x30] sm:$0xff]
    %v110 = vld [vmem:[#allocation7 + $0x38] sm:$0xff]
    %v111 = vld [vmem:[#allocation7 + $0x40] sm:$0xff]
    %v112 = vld [vmem:[#allocation7 + $0x48] sm:$0xff]
    %v113 = vld [vmem:[#allocation7 + $0x50] sm:$0xff]
    %v114 = vld [vmem:[#allocation7 + $0x58] sm:$0xff]
    %v115 = vld [vmem:[#allocation7 + $0x60] sm:$0xff]
    %v116 = vld [vmem:[#allocation7 + $0x68] sm:$0xff]
    %v117 = vld [vmem:[#allocation7 + $0x70] sm:$0xff]
    %v118 = vld [vmem:[#allocation7 + $0x78] sm:$0xff]
    %v119 = vld [vmem:[#allocation7 + $0x80] sm:$0xff]
    %v120 = vld [vmem:[#allocation7 + $0x88] sm:$0xff]
    %v121 = vld [vmem:[#allocation7 + $0x90] sm:$0xff]
    %v122 = vld [vmem:[#allocation7 + $0x98] sm:$0xff]
    %v123 = vld [vmem:[#allocation7 + $0xa0] sm:$0xff]
    %v124 = vld [vmem:[#allocation7 + $0xa8] sm:$0xff]
    %v125 = vld [vmem:[#allocation7 + $0xb0] sm:$0xff]
    %v126 = vld [vmem:[#allocation7 + $0xb8] sm:$0xff]
    %v127 = vld [vmem:[#allocation7 + $0xc0] sm:$0xff]
    %v128 = vld [vmem:[#allocation7 + $0xc8] sm:$0xff]
    %v129 = vld [vmem:[#allocation7 + $0xd0] sm:$0xff]
    %v130 = vld [vmem:[#allocation7 + $0xd8] sm:$0xff]
    %v131 = vld [vmem:[#allocation7 + $0xe0] sm:$0xff]
    %v132 = vld [vmem:[#allocation7 + $0xe8] sm:$0xff]
    %v133 = vld [vmem:[#allocation7 + $0xf0] sm:$0xff]
    %v134 = vld [vmem:[#allocation7 + $0xf8] sm:$0xff]
    %v135 = vld [vmem:[#allocation7 + $0x100] sm:$0xff]
    %v136 = vld [vmem:[#allocation7 + $0x108] sm:$0xff]
    %v137 = vld [vmem:[#allocation7 + $0x110] sm:$0xff]
    %v138 = vld [vmem:[#allocation7 + $0x118] sm:$0xff]
    %v139 = vld [vmem:[#allocation7 + $0x120] sm:$0xff]
    %v140 = vld [vmem:[#allocation7 + $0x128] sm:$0xff]
    %v141 = vld [vmem:[#allocation7 + $0x130] sm:$0xff]
    %v142 = vld [vmem:[#allocation7 + $0x138] sm:$0xff]
    %v143 = vld [vmem:[#allocation7 + $0x140] sm:$0xff]
    %v144 = vld [vmem:[#allocation7 + $0x148] sm:$0xff]
    %v145 = vld [vmem:[#allocation7 + $0x150] sm:$0xff]
    %v146 = vld [vmem:[#allocation7 + $0x158] sm:$0xff]
    %v147 = vld [vmem:[#allocation7 + $0x160] sm:$0xff]
    %v148 = vld [vmem:[#allocation7 + $0x168] sm:$0xff]
    %v149 = vld [vmem:[#allocation7 + $0x170] sm:$0xff]
    %v150 = vld [vmem:[#allocation7 + $0x178] sm:$0xff]
    %v151 = vld [vmem:[#allocation7 + $0x180] sm:$0xff]
    %v152 = vld [vmem:[#allocation7 + $0x188] sm:$0xff]
    %v153 = vld [vmem:[#allocation7 + $0x190] sm:$0xff]
    %v154 = vld [vmem:[#allocation7 + $0x198] sm:$0xff]
    %v155 = vld [vmem:[#allocation7 + $0x1a0] sm:$0xff]
    %v156 = vld [vmem:[#allocation7 + $0x1a8] sm:$0xff]
    %v157 = vld [vmem:[#allocation7 + $0x1b0] sm:$0xff]
    %v158 = vld [vmem:[#allocation7 + $0x1b8] sm:$0xff]
    %v159 = vld [vmem:[#allocation7 + $0x1c0] sm:$0xff]
    %v160 = vld [vmem:[#allocation7 + $0x1c8] sm:$0xff]
    %v161 = vld [vmem:[#allocation7 + $0x1d0] sm:$0xff]
    %v162 = vld [vmem:[#allocation7 + $0x1d8] sm:$0xff]
    %v163 = vld [vmem:[#allocation7 + $0x1e0] sm:$0xff]
    %v164 = vld [vmem:[#allocation7 + $0x1e8] sm:$0xff]
    %v165 = vld [vmem:[#allocation7 + $0x1f0] sm:$0xff]
    %v166 = vld [vmem:[#allocation7 + $0x1f8] sm:$0xff]
    %v167 = vld [vmem:[#allocation8] sm:$0xf]
    %v169 = vlaneseq
    %v170 = vshrl.u32 %v169, 7
    %v171 = vsub.s32 0, %v170
    %v172 = vrot.slane %v167, %v171
    %v173 = vlaneseq
    %v174 = vshrl.u32 %v173, 7
    %v175 = vsub.s32 1, %v174
    %v176 = vrot.slane %v167, %v175
    %v177 = vlaneseq
    %v178 = vshrl.u32 %v177, 7
    %v179 = vsub.s32 2, %v178
    %v180 = vrot.slane %v167, %v179
    %v181 = vlaneseq
    %v182 = vshrl.u32 %v181, 7
    %v183 = vsub.s32 3, %v182
    %v184 = vrot.slane %v167, %v183
    %v190 = vunpack.c.l.b16 %v102
    %v191 = vunpack.c.h.b16 %v102
    %v192 = vpack.c.b16 %v190, %v190
    %v193 = vpack.c.b16 %v191, %v191
    %v260 = vunpack.c.l.b16 %v103
    %v261 = vunpack.c.h.b16 %v103
    %v262 = vunpack.c.l.b16 %v104
    %v263 = vunpack.c.h.b16 %v104
    %v264 = vunpack.c.l.b16 %v105
    %v265 = vunpack.c.h.b16 %v105
    %v266 = vunpack.c.l.b16 %v106
    %v267 = vunpack.c.h.b16 %v106
    %v268 = vunpack.c.l.b16 %v107
    %v269 = vunpack.c.h.b16 %v107
    %v270 = vunpack.c.l.b16 %v108
    %v271 = vunpack.c.h.b16 %v108
    %v272 = vunpack.c.l.b16 %v109
    %v273 = vunpack.c.h.b16 %v109
    %v274 = vunpack.c.l.b16 %v110
    %v275 = vunpack.c.h.b16 %v110
    %v276 = vunpack.c.l.b16 %v111
    %v277 = vunpack.c.h.b16 %v111
    %v278 = vunpack.c.l.b16 %v112
    %v279 = vunpack.c.h.b16 %v112
    %v280 = vunpack.c.l.b16 %v113
    %v281 = vunpack.c.h.b16 %v113
    %v282 = vunpack.c.l.b16 %v114
    %v283 = vunpack.c.h.b16 %v114
    %v284 = vunpack.c.l.b16 %v115
    %v285 = vunpack.c.h.b16 %v115
    %v286 = vunpack.c.l.b16 %v116
    %v287 = vunpack.c.h.b16 %v116
    %v288 = vunpack.c.l.b16 %v117
    %v289 = vunpack.c.h.b16 %v117
    %v290 = vunpack.c.l.b16 %v118
    %v291 = vunpack.c.h.b16 %v118
    %v292 = vunpack.c.l.b16 %v119
    %v293 = vunpack.c.h.b16 %v119
    %v294 = vunpack.c.l.b16 %v120
    %v295 = vunpack.c.h.b16 %v120
    %v296 = vunpack.c.l.b16 %v121
    %v297 = vunpack.c.h.b16 %v121
    %v298 = vunpack.c.l.b16 %v122
    %v299 = vunpack.c.h.b16 %v122
    %v300 = vunpack.c.l.b16 %v123
    %v301 = vunpack.c.h.b16 %v123
    %v302 = vunpack.c.l.b16 %v124
    %v303 = vunpack.c.h.b16 %v124
    %v304 = vunpack.c.l.b16 %v125
    %v305 = vunpack.c.h.b16 %v125
    %v306 = vunpack.c.l.b16 %v126
    %v307 = vunpack.c.h.b16 %v126
    %v308 = vunpack.c.l.b16 %v127
    %v309 = vunpack.c.h.b16 %v127
    %v310 = vunpack.c.l.b16 %v128
    %v311 = vunpack.c.h.b16 %v128
    %v312 = vunpack.c.l.b16 %v129
    %v313 = vunpack.c.h.b16 %v129
    %v314 = vunpack.c.l.b16 %v130
    %v315 = vunpack.c.h.b16 %v130
    %v316 = vunpack.c.l.b16 %v131
    %v317 = vunpack.c.h.b16 %v131
    %v318 = vunpack.c.l.b16 %v132
    %v319 = vunpack.c.h.b16 %v132
    %v320 = vunpack.c.l.b16 %v133
    %v321 = vunpack.c.h.b16 %v133
    %v322 = vunpack.c.l.b16 %v134
    %v323 = vunpack.c.h.b16 %v134
    %v324 = vunpack.c.l.b16 %v135
    %v325 = vunpack.c.h.b16 %v135
    %v326 = vunpack.c.l.b16 %v136
    %v327 = vunpack.c.h.b16 %v136
    %v328 = vunpack.c.l.b16 %v137
    %v329 = vunpack.c.h.b16 %v137
    %v330 = vunpack.c.l.b16 %v138
    %v331 = vunpack.c.h.b16 %v138
    %v332 = vunpack.c.l.b16 %v139
    %v333 = vunpack.c.h.b16 %v139
    %v334 = vunpack.c.l.b16 %v140
    %v335 = vunpack.c.h.b16 %v140
    %v336 = vunpack.c.l.b16 %v141
    %v337 = vunpack.c.h.b16 %v141
    %v338 = vunpack.c.l.b16 %v142
    %v339 = vunpack.c.h.b16 %v142
    %v340 = vunpack.c.l.b16 %v143
    %v341 = vunpack.c.h.b16 %v143
    %v342 = vunpack.c.l.b16 %v144
    %v343 = vunpack.c.h.b16 %v144
    %v344 = vunpack.c.l.b16 %v145
    %v345 = vunpack.c.h.b16 %v145
    %v346 = vunpack.c.l.b16 %v146
    %v347 = vunpack.c.h.b16 %v146
    %v348 = vunpack.c.l.b16 %v147
    %v349 = vunpack.c.h.b16 %v147
    %v350 = vunpack.c.l.b16 %v148
    %v351 = vunpack.c.h.b16 %v148
    %v352 = vunpack.c.l.b16 %v149
    %v353 = vunpack.c.h.b16 %v149
    %v354 = vunpack.c.l.b16 %v150
    %v355 = vunpack.c.h.b16 %v150
    %v356 = vunpack.c.l.b16 %v151
    %v357 = vunpack.c.h.b16 %v151
    %v358 = vunpack.c.l.b16 %v152
    %v359 = vunpack.c.h.b16 %v152
    %v360 = vunpack.c.l.b16 %v153
    %v361 = vunpack.c.h.b16 %v153
    %v362 = vunpack.c.l.b16 %v154
    %v363 = vunpack.c.h.b16 %v154
    %v364 = vunpack.c.l.b16 %v155
    %v365 = vunpack.c.h.b16 %v155
    %v366 = vunpack.c.l.b16 %v156
    %v367 = vunpack.c.h.b16 %v156
    %v368 = vunpack.c.l.b16 %v157
    %v369 = vunpack.c.h.b16 %v157
    %v370 = vunpack.c.l.b16 %v158
    %v371 = vunpack.c.h.b16 %v158
    %v372 = vunpack.c.l.b16 %v159
    %v373 = vunpack.c.h.b16 %v159
    %v374 = vunpack.c.l.b16 %v160
    %v375 = vunpack.c.h.b16 %v160
    %v376 = vunpack.c.l.b16 %v161
    %v377 = vunpack.c.h.b16 %v161
    %v378 = vunpack.c.l.b16 %v162
    %v379 = vunpack.c.h.b16 %v162
    %v380 = vunpack.c.l.b16 %v163
    %v381 = vunpack.c.h.b16 %v163
    %v382 = vunpack.c.l.b16 %v164
    %v383 = vunpack.c.h.b16 %v164
    %v384 = vunpack.c.l.b16 %v165
    %v385 = vunpack.c.h.b16 %v165
    %v386 = vunpack.c.l.b16 %v166
    %v387 = vunpack.c.h.b16 %v166
    %v388 = vpack.c.b16 %v264, %v260
    %v389 = vpack.c.b16 %v265, %v261
    %v390 = vpack.c.b16 %v266, %v262
    %v391 = vpack.c.b16 %v267, %v263
    %v392 = vpack.c.b16 %v272, %v268
    %v393 = vpack.c.b16 %v273, %v269
    %v394 = vpack.c.b16 %v274, %v270
    %v395 = vpack.c.b16 %v275, %v271
    %v396 = vpack.c.b16 %v280, %v276
    %v397 = vpack.c.b16 %v281, %v277
    %v398 = vpack.c.b16 %v282, %v278
    %v399 = vpack.c.b16 %v283, %v279
    %v400 = vpack.c.b16 %v288, %v284
    %v401 = vpack.c.b16 %v289, %v285
    %v402 = vpack.c.b16 %v290, %v286
    %v403 = vpack.c.b16 %v291, %v287
    %v404 = vpack.c.b16 %v296, %v292
    %v405 = vpack.c.b16 %v297, %v293
    %v406 = vpack.c.b16 %v298, %v294
    %v407 = vpack.c.b16 %v299, %v295
    %v408 = vpack.c.b16 %v304, %v300
    %v409 = vpack.c.b16 %v305, %v301
    %v410 = vpack.c.b16 %v306, %v302
    %v411 = vpack.c.b16 %v307, %v303
    %v412 = vpack.c.b16 %v312, %v308
    %v413 = vpack.c.b16 %v313, %v309
    %v414 = vpack.c.b16 %v314, %v310
    %v415 = vpack.c.b16 %v315, %v311
    %v416 = vpack.c.b16 %v320, %v316
    %v417 = vpack.c.b16 %v321, %v317
    %v418 = vpack.c.b16 %v322, %v318
    %v419 = vpack.c.b16 %v323, %v319
    %v420 = vpack.c.b16 %v328, %v324
    %v421 = vpack.c.b16 %v329, %v325
    %v422 = vpack.c.b16 %v330, %v326
    %v423 = vpack.c.b16 %v331, %v327
    %v424 = vpack.c.b16 %v336, %v332
    %v425 = vpack.c.b16 %v337, %v333
    %v426 = vpack.c.b16 %v338, %v334
    %v427 = vpack.c.b16 %v339, %v335
    %v428 = vpack.c.b16 %v344, %v340
    %v429 = vpack.c.b16 %v345, %v341
    %v430 = vpack.c.b16 %v346, %v342
    %v431 = vpack.c.b16 %v347, %v343
    %v432 = vpack.c.b16 %v352, %v348
    %v433 = vpack.c.b16 %v353, %v349
    %v434 = vpack.c.b16 %v354, %v350
    %v435 = vpack.c.b16 %v355, %v351
    %v436 = vpack.c.b16 %v360, %v356
    %v437 = vpack.c.b16 %v361, %v357
    %v438 = vpack.c.b16 %v362, %v358
    %v439 = vpack.c.b16 %v363, %v359
    %v440 = vpack.c.b16 %v368, %v364
    %v441 = vpack.c.b16 %v369, %v365
    %v442 = vpack.c.b16 %v370, %v366
    %v443 = vpack.c.b16 %v371, %v367
    %v444 = vpack.c.b16 %v376, %v372
    %v445 = vpack.c.b16 %v377, %v373
    %v446 = vpack.c.b16 %v378, %v374
    %v447 = vpack.c.b16 %v379, %v375
    %v448 = vpack.c.b16 %v384, %v380
    %v449 = vpack.c.b16 %v385, %v381
    %v450 = vpack.c.b16 %v386, %v382
    %v451 = vpack.c.b16 %v387, %v383
    %516 = vmatprep.subr.bf16.mxu0 %v389
    %517 = vmatpush1.bf16.msra.mxu0 %v388
    %518 = vmatprep.subr.bf16.mxu0 %v393
    %519 = vmatpush1.bf16.msra.mxu0 %v392
    %520 = vmatprep.subr.bf16.mxu0 %v397
    %521 = vmatpush1.bf16.msra.mxu0 %v396
    %522 = vmatprep.subr.bf16.mxu0 %v401
    %523 = vmatpush1.bf16.msra.mxu0 %v400
    %524 = vmatprep.subr.bf16.mxu0 %v405
    %525 = vmatpush1.bf16.msra.mxu0 %v404
    %526 = vmatprep.subr.bf16.mxu0 %v409
    %527 = vmatpush1.bf16.msra.mxu0 %v408
    %528 = vmatprep.subr.bf16.mxu0 %v413
    %529 = vmatpush1.bf16.msra.mxu0 %v412
    %530 = vmatprep.subr.bf16.mxu0 %v417
    %531 = vmatpush1.bf16.msra.mxu0 %v416
    %532 = vmatprep.subr.bf16.mxu0 %v421
    %533 = vmatpush1.bf16.msra.mxu0 %v420
    %534 = vmatprep.subr.bf16.mxu0 %v425
    %535 = vmatpush1.bf16.msra.mxu0 %v424
    %536 = vmatprep.subr.bf16.mxu0 %v429
    %537 = vmatpush1.bf16.msra.mxu0 %v428
    %538 = vmatprep.subr.bf16.mxu0 %v433
    %539 = vmatpush1.bf16.msra.mxu0 %v432
    %540 = vmatprep.subr.bf16.mxu0 %v437
    %541 = vmatpush1.bf16.msra.mxu0 %v436
    %542 = vmatprep.subr.bf16.mxu0 %v441
    %543 = vmatpush1.bf16.msra.mxu0 %v440
    %544 = vmatprep.subr.bf16.mxu0 %v445
    %545 = vmatpush1.bf16.msra.mxu0 %v444
    %546 = vmatprep.subr.bf16.mxu0 %v449
    %547 = vmatpush1.bf16.msra.mxu0 %v448
    %548 = vmatprep.mubr.bf16.mxu0 %v193
    %549 = vmatmul.mubr.bf16.gmra.mrb[0].mxu0 %v192
    %v550 = vpop.f32.mrb[0].mxu0
    %v551 = vadd.f32 %v172, %v550
    %v552 = vpop.f32.mrb[0].mxu0
    %v553 = vadd.f32 %v176, %v552
    %v554 = vpop.f32.mrb[0].mxu0
    %v555 = vpop.f32.mrb[0].mxu0
    %556 = vdwg.mxu0
    %557 = vmatprep.subr.bf16.mxu0 %v391
    %558 = vmatpush1.bf16.msra.mxu0 %v390
    %559 = vmatprep.subr.bf16.mxu0 %v395
    %560 = vmatpush1.bf16.msra.mxu0 %v394
    %561 = vmatprep.subr.bf16.mxu0 %v399
    %562 = vmatpush1.bf16.msra.mxu0 %v398
    %563 = vmatprep.subr.bf16.mxu0 %v403
    %564 = vmatpush1.bf16.msra.mxu0 %v402
    %565 = vmatprep.subr.bf16.mxu0 %v407
    %566 = vmatpush1.bf16.msra.mxu0 %v406
    %567 = vmatprep.subr.bf16.mxu0 %v411
    %568 = vmatpush1.bf16.msra.mxu0 %v410
    %569 = vmatprep.subr.bf16.mxu0 %v415
    %570 = vmatpush1.bf16.msra.mxu0 %v414
    %571 = vmatprep.subr.bf16.mxu0 %v419
    %572 = vmatpush1.bf16.msra.mxu0 %v418
    %573 = vmatprep.subr.bf16.mxu0 %v423
    %574 = vmatpush1.bf16.msra.mxu0 %v422
    %575 = vmatprep.subr.bf16.mxu0 %v427
    %576 = vmatpush1.bf16.msra.mxu0 %v426
    %577 = vmatprep.subr.bf16.mxu0 %v431
    %578 = vmatpush1.bf16.msra.mxu0 %v430
    %579 = vmatprep.subr.bf16.mxu0 %v435
    %580 = vmatpush1.bf16.msra.mxu0 %v434
    %581 = vmatprep.subr.bf16.mxu0 %v439
    %582 = vmatpush1.bf16.msra.mxu0 %v438
    %583 = vmatprep.subr.bf16.mxu0 %v443
    %584 = vmatpush1.bf16.msra.mxu0 %v442
    %585 = vmatprep.subr.bf16.mxu0 %v447
    %586 = vmatpush1.bf16.msra.mxu0 %v446
    %587 = vmatprep.subr.bf16.mxu0 %v451
    %588 = vmatpush1.bf16.msra.mxu0 %v450
    %589 = vmatprep.mubr.bf16.mxu0 %v193
    %590 = vmatmul.mubr.bf16.gmra.mrb[0].mxu0 %v192
    %v591 = vpop.f32.mrb[0].mxu0
    %v592 = vadd.f32 %v180, %v591
    %v593 = vpop.f32.mrb[0].mxu0
    %v594 = vadd.f32 %v184, %v593
    %v595 = vpop.f32.mrb[0].mxu0
    %v596 = vpop.f32.mrb[0].mxu0
    %597 = vdwg.mxu0
    %v598 = vld [vmem:[#allocation5] sm:$0xff]
    %v599 = vld [vmem:[#allocation10] sm:$0x1]
    %v600 = vld [vmem:[#allocation10 + $0x1] sm:$0x1]
    %v601 = vld [vmem:[#allocation10 + $0x2] sm:$0x1]
    %v602 = vlaneseq
    %v603 = vshrl.u32 %v602, 7
    %v604 = vsub.s32 0, %v603
    %v605 = vrot.slane %v599, %v604
    %v606 = vmul.f32 %v605, %v598
    %v607 = vadd.f32 %v592, %v606
    %v608 = vmul.f32 %v607, 0.5
    %v609 = vtanh.pop %v608
    %v610 = vmul.f32 %v609, 0.5
    %v611 = vadd.f32 %v610, 0.5
    %v612 = vmul.f32 %v611, %v598
    %v613 = vlaneseq
    %v614 = vshrl.u32 %v613, 7
    %v615 = vsub.s32 0, %v614
    %v616 = vrot.slane %v600, %v615
    %v617 = vmul.f32 %v616, %v598
    %v618 = vadd.f32 %v551, %v617
    %v619 = vmul.f32 %v618, 0.5
    %v620 = vtanh.pop %v619
    %v621 = vmul.f32 %v620, 0.5
    %v622 = vadd.f32 %v621, 0.5
    %v623 = vtanh.pop %v553
    %v624 = vmul.f32 %v622, %v623
    %v625 = vadd.f32 %v612, %v624
    %v626 = vlaneseq
    %v627 = vshrl.u32 %v626, 7
    %v628 = vsub.s32 0, %v627
    %v629 = vrot.slane %v601, %v628
    %v630 = vmul.f32 %v629, %v625
    %v631 = vadd.f32 %v594, %v630
    %v632 = vmul.f32 %v631, 0.5
    %v633 = vtanh.pop %v632
    %v634 = vmul.f32 %v633, 0.5
    %v635 = vadd.f32 %v634, 0.5
    %v636 = vtanh.pop %v625
    %v637 = vmul.f32 %v635, %v636
    %v638 = vpack.c.bf16 %v637, %v637
    %v639 = vld [vmem:[#allocation11] sm:$0xf]
    %v640 = vld [vmem:[#allocation11 + $0x4] sm:$0xf]
    %v641 = vld [vmem:[#allocation11 + $0x8] sm:$0xf]
    %v642 = vld [vmem:[#allocation11 + $0xc] sm:$0xf]
    %v643 = vld [vmem:[#allocation11 + $0x10] sm:$0xf]
    %v644 = vld [vmem:[#allocation11 + $0x14] sm:$0xf]
    %v645 = vld [vmem:[#allocation11 + $0x18] sm:$0xf]
    %v646 = vld [vmem:[#allocation11 + $0x1c] sm:$0xf]
    %v647 = vld [vmem:[#allocation11 + $0x20] sm:$0xf]
    %v648 = vld [vmem:[#allocation11 + $0x24] sm:$0xf]
    %v649 = vld [vmem:[#allocation11 + $0x28] sm:$0xf]
    %v650 = vld [vmem:[#allocation11 + $0x2c] sm:$0xf]
    %v651 = vld [vmem:[#allocation11 + $0x30] sm:$0xf]
    %v652 = vld [vmem:[#allocation11 + $0x34] sm:$0xf]
    %v653 = vld [vmem:[#allocation11 + $0x38] sm:$0xf]
    %v654 = vld [vmem:[#allocation11 + $0x3c] sm:$0xf]
    %v671 = vunpack.c.l.b16 %v639
    %v672 = vunpack.c.l.b16 %v640
    %v673 = vunpack.c.l.b16 %v641
    %v674 = vunpack.c.l.b16 %v642
    %v675 = vunpack.c.l.b16 %v643
    %v676 = vunpack.c.l.b16 %v644
    %v677 = vunpack.c.l.b16 %v645
    %v678 = vunpack.c.l.b16 %v646
    %v679 = vunpack.c.l.b16 %v647
    %v680 = vunpack.c.l.b16 %v648
    %v681 = vunpack.c.l.b16 %v649
    %v682 = vunpack.c.l.b16 %v650
    %v683 = vunpack.c.l.b16 %v651
    %v684 = vunpack.c.l.b16 %v652
    %v685 = vunpack.c.l.b16 %v653
    %v686 = vunpack.c.l.b16 %v654
    %v687 = vpack.c.b16 %v672, %v671
    %v688 = vpack.c.b16 %v674, %v673
    %v689 = vpack.c.b16 %v676, %v675
    %v690 = vpack.c.b16 %v678, %v677
    %v691 = vpack.c.b16 %v680, %v679
    %v692 = vpack.c.b16 %v682, %v681
    %v693 = vpack.c.b16 %v684, %v683
    %v694 = vpack.c.b16 %v686, %v685
    %703 = vmatprep.subr.bf16.mxu0 0
    %704 = vmatpush1.bf16.msra.mxu0 %v687
    %705 = vmatprep.subr.bf16.mxu0 0
    %706 = vmatpush1.bf16.msra.mxu0 %v688
    %707 = vmatprep.subr.bf16.mxu0 0
    %708 = vmatpush1.bf16.msra.mxu0 %v689
    %709 = vmatprep.subr.bf16.mxu0 0
    %710 = vmatpush1.bf16.msra.mxu0 %v690
    %711 = vmatprep.subr.bf16.mxu0 0
    %712 = vmatpush1.bf16.msra.mxu0 %v691
    %713 = vmatprep.subr.bf16.mxu0 0
    %714 = vmatpush1.bf16.msra.mxu0 %v692
    %715 = vmatprep.subr.bf16.mxu0 0
    %716 = vmatpush1.bf16.msra.mxu0 %v693
    %717 = vmatprep.subr.bf16.mxu0 0
    %718 = vmatpush1.bf16.msra.mxu0 %v694
    %719 = vmatprep.subr.bf16.mxu0 0
    %720 = vmatpush1.bf16.msra.mxu0 0
    %721 = vmatprep.subr.bf16.mxu0 0
    %722 = vmatpush1.bf16.msra.mxu0 0
    %723 = vmatprep.subr.bf16.mxu0 0
    %724 = vmatpush1.bf16.msra.mxu0 0
    %725 = vmatprep.subr.bf16.mxu0 0
    %726 = vmatpush1.bf16.msra.mxu0 0
    %727 = vmatprep.subr.bf16.mxu0 0
    %728 = vmatpush1.bf16.msra.mxu0 0
    %729 = vmatprep.subr.bf16.mxu0 0
    %730 = vmatpush1.bf16.msra.mxu0 0
    %731 = vmatprep.subr.bf16.mxu0 0
    %732 = vmatpush1.bf16.msra.mxu0 0
    %733 = vmatprep.subr.bf16.mxu0 0
    %734 = vmatpush1.bf16.msra.mxu0 0
    %735 = vmatprep.mubr.bf16.mxu0 0
    %736 = vmatmul.mubr.bf16.gmra.mrb[0].mxu0 %v638
    %v737 = vpop.f32.mrb[0].mxu0
    %v738 = vadd.f32 0.0, %v737
    %v739 = vpop.f32.mrb[0].mxu0
    %v740 = vpop.f32.mrb[0].mxu0
    %v741 = vpop.f32.mrb[0].mxu0
    %742 = vdwg.mxu0
    %743 = vst [vmem:[#allocation13] sm:$0xff] %v738
    %744 = vst [vmem:[#allocation14] sm:$0xff] %v625
    // Predicated region
    $region50: #{_tf_lstm_cell_impl.1} parent=1 // pred_check
      _
    $region51: #{_tf_lstm_cell_impl.1} parent=1 // pred_check_branch
      %746 = sbr.rel (0) target = $region53
    $region52: #{_tf_lstm_cell_impl.1} parent=1 // pred_region
      %s748 = ssub.s32 128, 128
      %749 = vsyncadd [#allocation4], %s748
      %s751 = sshll.u32 [#allocation13], 4
      %s752 = int_to_ptr.vmem [resolvable:$true] %s751
      %754 = dma.vmem_to_hbm [thread:$0]  %s752, 128, %s6, [#allocation4]
    $region53: #{_tf_lstm_cell_impl.1} parent=1 // pred_fallthru
      _
    // Predicated region
    $region54: #{_tf_lstm_cell_impl.1} parent=1 // pred_check
      _
    $region55: #{_tf_lstm_cell_impl.1} parent=1 // pred_check_branch
      %756 = sbr.rel (0) target = $region57
    $region56: #{_tf_lstm_cell_impl.1} parent=1 // pred_region
      %s758 = ssub.s32 128, 128
      %759 = vsyncadd [#allocation15], %s758
      %s761 = sshll.u32 [#allocation14], 4
      %s762 = int_to_ptr.vmem [resolvable:$true] %s761
      %764 = dma.vmem_to_hbm [thread:$0]  %s762, 128, %s7, [#allocation15]
    $region57: #{_tf_lstm_cell_impl.1} parent=1 // pred_fallthru
      _
    // Predicated region
    $region58: #{_tf_lstm_cell_impl.1} parent=1 // pred_check
      _
    $region59: #{_tf_lstm_cell_impl.1} parent=1 // pred_check_branch
      %766 = sbr.rel (0) target = $region61
    $region60: #{_tf_lstm_cell_impl.1} parent=1 // pred_region
      %767 = dma.done [#allocation4], 128
    $region61: #{_tf_lstm_cell_impl.1} parent=1 // pred_fallthru
      _
    // Predicated region
    $region62: #{_tf_lstm_cell_impl.1} parent=1 // pred_check
      _
    $region63: #{_tf_lstm_cell_impl.1} parent=1 // pred_check_branch
      %769 = sbr.rel (0) target = $region65
    $region64: #{_tf_lstm_cell_impl.1} parent=1 // pred_region
      %770 = dma.done [#allocation15], 128
    $region65: #{_tf_lstm_cell_impl.1} parent=1 // pred_fallthru
      _
    %771 = vsyncpa [#allocation3], 1
    %772 = vsyncpa [#allocation6], 1
    %773 = vsyncpa [#allocation9], 1
    %774 = vsyncpa [#allocation12], 1
    %775 = vsyncpa [#allocation4], 1
    %776 = vsyncpa [#allocation15], 1

</llo_original>
